<compile_context>
chip_gen: v5e
topology: v5e:2x2
jax: 0.10.0
libtpu: 0.0.40
codegen_flags: <defaults>
</compile_context>

<pallas_src>
import jax
import jax.numpy as jnp
from jax import lax
from jax.experimental import pallas as pl
from jax.experimental.pallas import tpu as pltpu

C_IN, C_OUT = 3, 128
H, W = 6, 7
KH, KW = 3, 3
K_IN = C_IN * H * W            # 126 : flattened input board (c, h, w)
K_PAD = 128                    # contraction dim zero-padded to a full lane block
N_OUT = C_OUT * H * W          # 5376: flattened NCHW output per board (o, h, w)
BN_EPS = 1e-5


def _round_up(x, m):
    return (x + m - 1) // m * m


def _fold_conv_weight(conv_w):
    """Fold the 3x3 / pad=1 conv (incl. its zero padding) into (K_PAD, 5376).

    Row index  = c*42 + h_in*7 + w_in   (NCHW-flattened input; rows 126..127 are zero pad)
    Col index  = o*42 + h_out*7 + w_out (NCHW-flattened output)
    """
    w = conv_w.astype(jnp.float32)                                    # (O, C, KH, KW)
    kh = jnp.arange(KH)[:, None, None]
    eh = (jnp.arange(H)[None, :, None] ==
          jnp.arange(H)[None, None, :] + kh - 1).astype(jnp.float32)  # (KH, Hin, Hout)
    kw = jnp.arange(KW)[:, None, None]
    ew = (jnp.arange(W)[None, :, None] ==
          jnp.arange(W)[None, None, :] + kw - 1).astype(jnp.float32)  # (KW, Win, Wout)
    w_full = jnp.einsum('xph,yqw,ocxy->cpqohw', eh, ew, w)            # (C,Hin,Win,O,Hout,Wout)
    w_full = w_full.reshape(K_IN, N_OUT)
    return jnp.pad(w_full, ((0, K_PAD - K_IN), (0, 0)))               # (128, 5376)


def _conv_bn_relu_kernel(x_ref, w_ref, ss_ref, o_ref):
    # x_ref : (tn, 128)   zero-padded flattened boards (extra rows are all-zero)
    # w_ref : (128, 5376) folded conv weights (grid-invariant, single-buffered)
    # ss_ref: (2, 5376)   row 0 = per-column BN scale, row 1 = per-column BN shift
    # o_ref : (tn, 5376)  flattened NCHW output rows -> lane-dense f32 stores
    y = jnp.dot(x_ref[...], w_ref[...], preferred_element_type=jnp.float32)
    o_ref[...] = jnp.maximum(y * ss_ref[0:1, :] + ss_ref[1:2, :], 0.0)


def _resident_spec(block_shape, index_map):
    """BlockSpec for a grid-invariant operand: request single-buffering to save
    VMEM; fall back silently if this Pallas version lacks `pipeline_mode`."""
    try:
        return pl.BlockSpec(block_shape, index_map, pipeline_mode=pl.Buffered(1))
    except (TypeError, AttributeError):
        return pl.BlockSpec(block_shape, index_map)


def _pick_tiling():
    """Per-generation (tile height, vmem limit, minimum grid steps)."""
    try:
        vmem_bytes = int(pltpu.get_tpu_info().vmem_capacity_bytes)
    except Exception:
        vmem_bytes = 64 * 1024 * 1024          # conservative (v7x-sized) fallback
    if vmem_bytes >= 96 * 1024 * 1024:
        # v5e / v6e: 128 MiB physical VMEM -> big tiles, raise the scoped limit.
        return 1024, 100 * 1024 * 1024, 1
    # v7x: 64 MiB per TensorCore, 2 cores -> cap tile, keep headroom, >= 2 steps.
    return 512, 56 * 1024 * 1024, 2


def convolutional_block(s, conv_w, conv_b, bn_gamma, bn_beta):
    """Forward of ConvolutionalBlock: relu(batchnorm_train(conv3x3(s))).

    s: anything reshapeable to (-1, 3, 6, 7).  Returns (N, 128, 6, 7) float32 (NCHW).
    """
    x = jnp.reshape(s, (-1, C_IN, H, W)).astype(jnp.float32)
    n = x.shape[0]
    m = n * H * W                              # elements per channel for batch stats

    # Conv bias cancels exactly under training-mode batch norm -> unused.
    del conv_b

    w_full = _fold_conv_weight(conv_w)                                  # (128, 5376)
    x_flat = jnp.pad(x.reshape(n, K_IN), ((0, 0), (0, K_PAD - K_IN)))   # (n, 128)

    # ---- Analytic train-mode BN statistics (no stats pass over activations).
    # col_sum[c]   = sum_n y[n, c]   = (sum_n x_n) @ W_full
    # col_sumsq[c] = sum_n y[n, c]^2 = W_full[:, c]^T (X^T X) W_full[:, c]
    # Note: E[y^2] - mean^2 variance shares the usual cancellation caveat; fine
    # at 1e-4 for these magnitudes.
    col_sum = jnp.sum(x_flat, axis=0) @ w_full                          # (5376,)
    gram = x_flat.T @ x_flat                                            # (128, 128)
    col_sumsq = jnp.sum(w_full * (gram @ w_full), axis=0)               # (5376,)
    ch_sum = col_sum.reshape(C_OUT, H * W).sum(axis=1)                  # (128,)
    ch_sumsq = col_sumsq.reshape(C_OUT, H * W).sum(axis=1)              # (128,)
    mean = ch_sum / m
    var = ch_sumsq / m - mean * mean                                    # biased (train-mode)
    scale = bn_gamma.astype(jnp.float32) * lax.rsqrt(var + BN_EPS)
    shift = bn_beta.astype(jnp.float32) - mean * scale
    scale_shift = jnp.stack(
        [jnp.repeat(scale, H * W), jnp.repeat(shift, H * W)], axis=0)   # (2, 5376)

    # ---- Tiling: minimal row padding for ragged batches, per-chip tile height.
    tile_n, vmem_limit, min_tiles = _pick_tiling()
    num_tiles = -(-n // tile_n)
    if n >= 16 * min_tiles:                    # give both cores work, never shard a tiny batch
        num_tiles = max(num_tiles, min_tiles)
    tn = _round_up(-(-n // num_tiles), 8)
    n_pad = num_tiles * tn
    if n_pad != n:
        # Padded rows are all-zero; their outputs are sliced off below.  They do
        # not touch the statistics (computed above from the unpadded batch).
        x_flat = jnp.pad(x_flat, ((0, n_pad - n), (0, 0)))

    out = pl.pallas_call(
        _conv_bn_relu_kernel,
        out_shape=jax.ShapeDtypeStruct((n_pad, N_OUT), jnp.float32),
        grid=(num_tiles,),
        in_specs=[
            pl.BlockSpec((tn, K_PAD), lambda i: (i, 0)),
            _resident_spec((K_PAD, N_OUT), lambda i: (0, 0)),
            _resident_spec((2, N_OUT), lambda i: (0, 0)),
        ],
        out_specs=pl.BlockSpec((tn, N_OUT), lambda i: (i, 0)),
        compiler_params=pltpu.CompilerParams(
            dimension_semantics=("parallel",),
            vmem_limit_bytes=vmem_limit,
        ),
    )(x_flat, w_full, scale_shift)

    # Rows are already (c, h, w)-major -> plain reshape, no NHWC->NCHW transpose.
    return out[:n].reshape(n, C_OUT, H, W)


def _reference(s, conv_w, conv_b, bn_gamma, bn_beta):
    """Pure-JAX reference (conv + train-mode BN + ReLU) for a sanity check."""
    x = jnp.reshape(s, (-1, C_IN, H, W)).astype(jnp.float32)
    y = lax.conv_general_dilated(
        x, conv_w.astype(jnp.float32),
        window_strides=(1, 1), padding=((1, 1), (1, 1)),
        dimension_numbers=("NCHW", "OIHW", "NCHW"),
    ) + conv_b.reshape(1, C_OUT, 1, 1)
    mean = jnp.mean(y, axis=(0, 2, 3), keepdims=True)
    var = jnp.mean((y - mean) ** 2, axis=(0, 2, 3), keepdims=True)
    y = (y - mean) * lax.rsqrt(var + BN_EPS) * bn_gamma.reshape(1, C_OUT, 1, 1) \
        + bn_beta.reshape(1, C_OUT, 1, 1)
    return jnp.maximum(y, 0.0)


if __name__ == "__main__":
    key = jax.random.PRNGKey(0)
    k_s, k_w, k_b, k_s2 = jax.random.split(key, 4)

    # Deterministic parameters (shapes from nn.Conv2d(3,128,3) / BatchNorm2d(128)).
    fan_in = C_IN * KH * KW
    conv_w = jax.random.normal(k_w, (C_OUT, C_IN, KH, KW), dtype=jnp.float32) / jnp.sqrt(fan_in)
    conv_b = 0.01 * jax.random.normal(k_b, (C_OUT,), dtype=jnp.float32)
    bn_gamma = jnp.ones((C_OUT,), dtype=jnp.float32)   # PyTorch BN default weight
    bn_beta = jnp.zeros((C_OUT,), dtype=jnp.float32)   # PyTorch BN default bias

    # Small batch (exercises zero row padding: 2 -> 8 rows).
    N1 = 2
    s1 = jax.random.normal(k_s, (N1, C_IN, H, W), dtype=jnp.float32)
    out1 = jax.block_until_ready(convolutional_block(s1, conv_w, conv_b, bn_gamma, bn_beta))
    ref1 = _reference(s1, conv_w, conv_b, bn_gamma, bn_beta)
    assert out1.shape == (N1, C_OUT, H, W), out1.shape
    assert jnp.allclose(out1, ref1, atol=1e-4, rtol=1e-3), float(jnp.max(jnp.abs(out1 - ref1)))

    # Larger flattened batch (exercises ragged tiling + multi-tile grid + analytic stats).
    N2 = 300
    s2 = jax.random.normal(k_s2, (N2, C_IN * H * W), dtype=jnp.float32)
    out2 = jax.block_until_ready(convolutional_block(s2, conv_w, conv_b, bn_gamma, bn_beta))
    ref2 = _reference(s2, conv_w, conv_b, bn_gamma, bn_beta)
    assert out2.shape == (N2, C_OUT, H, W), out2.shape
    assert jnp.allclose(out2, ref2, atol=1e-4, rtol=1e-3), float(jnp.max(jnp.abs(out2 - ref2)))

    print("KERNEL_OK")
</pallas_src>

<mosaic_0001>
module attributes {stable_mosaic.version = 11 : i64} {
  func.func @_conv_bn_relu_kernel(%arg0: i32, %arg1: memref<8x128xf32, #tpu.memory_space<vmem>>, %arg2: memref<128x5376xf32, #tpu.memory_space<vmem>>, %arg3: memref<2x5376xf32, #tpu.memory_space<vmem>>, %arg4: memref<8x5376xf32, #tpu.memory_space<vmem>>) attributes {dimension_semantics = [#tpu.dimension_semantics<parallel>], iteration_bounds = array<i64: 1>, scalar_prefetch = 0 : i64, scratch_operands = 0 : i64, tpu.core_type = #tpu.core_type<tc>, window_params = [{transform_indices = @transform_0, window_bounds = array<i64: 8, 128>}, {pipeline_mode = #tpu.pipeline_mode<synchronous>, transform_indices = @transform_1, window_bounds = array<i64: 128, 5376>}, {pipeline_mode = #tpu.pipeline_mode<synchronous>, transform_indices = @transform_2, window_bounds = array<i64: 2, 5376>}, {transform_indices = @transform_3, window_bounds = array<i64: 8, 5376>}]} {
    %c0 = arith.constant 0 : index
    %c0_0 = arith.constant 0 : index
    %0 = vector.load %arg1[%c0, %c0_0] : memref<8x128xf32, #tpu.memory_space<vmem>>, vector<8x128xf32>
    %c0_1 = arith.constant 0 : index
    %c0_2 = arith.constant 0 : index
    %1 = vector.load %arg2[%c0_1, %c0_2] : memref<128x5376xf32, #tpu.memory_space<vmem>>, vector<128x5376xf32>
    %cst = arith.constant dense<0.000000e+00> : vector<8x5376xf32>
    %2 = tpu.matmul %0, %1, %cst {dimension_numbers = #tpu.dot_dimension_numbers<[1], [0], [0], [1], [0, 0, 1, 1], [], []>} : vector<8x128xf32>, vector<128x5376xf32>, vector<8x5376xf32> -> vector<8x5376xf32>
    %c0_3 = arith.constant 0 : index
    %c0_4 = arith.constant 0 : index
    %3 = vector.load %arg3[%c0_3, %c0_4] : memref<2x5376xf32, #tpu.memory_space<vmem>>, vector<1x5376xf32>
    %4 = vector.broadcast %3 : vector<1x5376xf32> to vector<8x5376xf32>
    %5 = arith.mulf %2, %4 : vector<8x5376xf32>
    %c1 = arith.constant 1 : index
    %c0_5 = arith.constant 0 : index
    %6 = vector.load %arg3[%c1, %c0_5] : memref<2x5376xf32, #tpu.memory_space<vmem>>, vector<1x5376xf32>
    %7 = vector.broadcast %6 : vector<1x5376xf32> to vector<8x5376xf32>
    %8 = arith.addf %5, %7 : vector<8x5376xf32>
    %cst_6 = arith.constant 0.000000e+00 : f32
    %9 = vector.broadcast %cst_6 : f32 to vector<8x5376xf32>
    %10 = arith.maximumf %8, %9 : vector<8x5376xf32>
    %c0_7 = arith.constant 0 : index
    %c0_8 = arith.constant 0 : index
    %11 = vector.load %arg4[%c0_7, %c0_8] : memref<8x5376xf32, #tpu.memory_space<vmem>>, vector<8x5376xf32>
    tpu.vector_store %arg4[%c0_7, %c0_8], %10 {strides = array<i32>} : memref<8x5376xf32, #tpu.memory_space<vmem>>, vector<8x5376xf32>,
    return
  }
  func.func @transform_0(%arg0: i32) -> (i32, i32) {
    %c0_i32 = arith.constant 0 : i32
    %c0_i32_0 = arith.constant 0 : i32
    return %arg0, %c0_i32 : i32, i32
  }
  func.func @transform_1(%arg0: i32) -> (i32, i32) {
    %c0_i32 = arith.constant 0 : i32
    %c0_i32_0 = arith.constant 0 : i32
    %c0_i32_1 = arith.constant 0 : i32
    return %c0_i32, %c0_i32_0 : i32, i32
  }
  func.func @transform_2(%arg0: i32) -> (i32, i32) {
    %c0_i32 = arith.constant 0 : i32
    %c0_i32_0 = arith.constant 0 : i32
    %c0_i32_1 = arith.constant 0 : i32
    return %c0_i32, %c0_i32_0 : i32, i32
  }
  func.func @transform_3(%arg0: i32) -> (i32, i32) {
    %c0_i32 = arith.constant 0 : i32
    %c0_i32_0 = arith.constant 0 : i32
    return %arg0, %c0_i32 : i32, i32
  }
}

</mosaic_0001>

<llo_original>
// kernel: tpu_custom_call.1
$region0: #{tpu_custom_call.1}
  #allocation0 [shape = 'u32[]', space=smem, size = 0x4, offset = 0x4, fixed_abs, tag = 'smem constant byte address 0x4 - core index']
  #allocation1 [shape = 'u32[72,128]{1,0:T(1,128)}', space=vmem, size = 0x9000, scoped, tag = 'internal scratch']
  %s0 = inlined_call_operand.hbm [shape: f32[8,128], index: 0, kind: input, shape index: {}]
  %s1 = inlined_call_operand.hbm [shape: f32[128,5376], index: 1, kind: input, shape index: {}]
  %s2 = inlined_call_operand.hbm [shape: f32[2,5376], index: 2, kind: input, shape index: {}]
  %s3 = inlined_call_operand.hbm [shape: f32[8,5376], index: 3, kind: output, shape index: {}]
  %s4 = sld [smem:[#allocation0]]
  $region34: #{tpu_custom_call.1} parent=0
    _
  %s6 = ssub.s32 1, %s4
  %s7 = scalar_select 0, %s6, %s4
  $region1: #{tpu_custom_call.1} parent=0
    #allocation2 [shape = 'u8[4096]{0}', space=vmem, size = 0x1000, scoped, tag = 'input window, operand 0, single buffered']
    #allocation3 [shape = 's32[1]{0}', space=sflag, size = 0x4, scoped, tag = 'scoped memory for tpu_custom_call.1']
    #allocation4 [shape = 's32[1]{0}', space=sflag, size = 0x4, scoped, tag = 'scoped memory for tpu_custom_call.1']
    #allocation5 [shape = 'u8[2752512]{0}', space=vmem, size = 0x2a0000, scoped, tag = 'input window, operand 1, single buffered']
    #allocation6 [shape = 's32[1]{0}', space=sflag, size = 0x4, scoped, tag = 'scoped memory for tpu_custom_call.1']
    #allocation7 [shape = 'u8[43008]{0}', space=vmem, size = 0xa800, scoped, tag = 'input window, operand 2, single buffered']
    #allocation8 [shape = 'u8[172032]{0}', space=vmem, size = 0x2a000, scoped, tag = 'output window, operand 0, single buffered']
    %8 = vsyncpa [#allocation3], 0
    %9 = vsyncpa [#allocation6], 0
    %10 = vsyncpa [#allocation4], 0
    // Predicated region
    $region2: #{tpu_custom_call.1} parent=1 // pred_check
      _
    $region3: #{tpu_custom_call.1} parent=1 // pred_check_branch
      %12 = sbr.rel (0) target = $region5
    $region4: #{tpu_custom_call.1} parent=1 // pred_region
      %14 = vsyncadd [#allocation3], 0
      %s16 = sshll.u32 %s0, 4
      %s17 = int_to_ptr.hbm [resolvable:$true] %s16
      %s18 = sshll.u32 [#allocation2], 4
      %s19 = int_to_ptr.vmem [resolvable:$true] %s18
      %21 = dma.hbm_to_vmem [thread:$0]  %s17, 128, %s19, [#allocation3]
    $region5: #{tpu_custom_call.1} parent=1 // pred_fallthru
      _
    // Predicated region
    $region6: #{tpu_custom_call.1} parent=1 // pred_check
      _
    $region7: #{tpu_custom_call.1} parent=1 // pred_check_branch
      %23 = sbr.rel (0) target = $region9
    $region8: #{tpu_custom_call.1} parent=1 // pred_region
      %25 = vsyncadd [#allocation6], 0
      %s26 = sshll.u32 %s1, 4
      %s27 = int_to_ptr.hbm [resolvable:$true] %s26
      %s28 = sshll.u32 [#allocation5], 4
      %s29 = int_to_ptr.vmem [resolvable:$true] %s28
      %34 = dma.hbm_to_vmem [thread:$0]  %s27, 86016, %s29, [#allocation6], 5376, 5376, 336
    $region9: #{tpu_custom_call.1} parent=1 // pred_fallthru
      _
    // Predicated region
    $region10: #{tpu_custom_call.1} parent=1 // pred_check
      _
    $region11: #{tpu_custom_call.1} parent=1 // pred_check_branch
      %36 = sbr.rel (0) target = $region13
    $region12: #{tpu_custom_call.1} parent=1 // pred_region
      %38 = vsyncadd [#allocation6], 0
      %s40 = sshll.u32 %s2, 4
      %s41 = int_to_ptr.hbm [resolvable:$true] %s40
      %s42 = sshll.u32 [#allocation7], 4
      %s43 = int_to_ptr.vmem [resolvable:$true] %s42
      %45 = dma.hbm_to_vmem [thread:$0]  %s41, 1344, %s43, [#allocation6]
    $region13: #{tpu_custom_call.1} parent=1 // pred_fallthru
      _
    // Predicated region
    $region14: #{tpu_custom_call.1} parent=1 // pred_check
      _
    $region15: #{tpu_custom_call.1} parent=1 // pred_check_branch
      %47 = sbr.rel (0) target = $region17
    $region16: #{tpu_custom_call.1} parent=1 // pred_region
      %49 = dma.done [#allocation3], 128
    $region17: #{tpu_custom_call.1} parent=1 // pred_fallthru
      _
    // Predicated region
    $region18: #{tpu_custom_call.1} parent=1 // pred_check
      _
    $region19: #{tpu_custom_call.1} parent=1 // pred_check_branch
      %51 = sbr.rel (0) target = $region21
    $region20: #{tpu_custom_call.1} parent=1 // pred_region
      %53 = dma.done [#allocation6], 86016
    $region21: #{tpu_custom_call.1} parent=1 // pred_fallthru
      _
    // Predicated region
    $region22: #{tpu_custom_call.1} parent=1 // pred_check
      _
    $region23: #{tpu_custom_call.1} parent=1 // pred_check_branch
      %55 = sbr.rel (0) target = $region25
    $region24: #{tpu_custom_call.1} parent=1 // pred_region
      %57 = dma.done [#allocation6], 1344
    $region25: #{tpu_custom_call.1} parent=1 // pred_fallthru
      _
    %v58 = vld [vmem:[#allocation2] sm:$0xff]
    %v59 = vld [vmem:[#allocation5] sm:$0xff]
    %v60 = vld [vmem:[#allocation5 + $0x8] sm:$0xff]
    %v61 = vld [vmem:[#allocation5 + $0x10] sm:$0xff]
    %v62 = vld [vmem:[#allocation5 + $0x18] sm:$0xff]
    %v63 = vld [vmem:[#allocation5 + $0x20] sm:$0xff]
    %v64 = vld [vmem:[#allocation5 + $0x28] sm:$0xff]
    %v65 = vld [vmem:[#allocation5 + $0x30] sm:$0xff]
    %v66 = vld [vmem:[#allocation5 + $0x38] sm:$0xff]
    %v67 = vld [vmem:[#allocation5 + $0x40] sm:$0xff]
    %v68 = vld [vmem:[#allocation5 + $0x48] sm:$0xff]
    %v69 = vld [vmem:[#allocation5 + $0x50] sm:$0xff]
    %v70 = vld [vmem:[#allocation5 + $0x58] sm:$0xff]
    %v71 = vld [vmem:[#allocation5 + $0x60] sm:$0xff]
    %v72 = vld [vmem:[#allocation5 + $0x68] sm:$0xff]
    %v73 = vld [vmem:[#allocation5 + $0x70] sm:$0xff]
    %v74 = vld [vmem:[#allocation5 + $0x78] sm:$0xff]
    %v75 = vld [vmem:[#allocation5 + $0x80] sm:$0xff]
    %v76 = vld [vmem:[#allocation5 + $0x88] sm:$0xff]
    %v77 = vld [vmem:[#allocation5 + $0x90] sm:$0xff]
    %v78 = vld [vmem:[#allocation5 + $0x98] sm:$0xff]
    %v79 = vld [vmem:[#allocation5 + $0xa0] sm:$0xff]
    %v80 = vld [vmem:[#allocation5 + $0xa8] sm:$0xff]
    %v81 = vld [vmem:[#allocation5 + $0xb0] sm:$0xff]
    %v82 = vld [vmem:[#allocation5 + $0xb8] sm:$0xff]
    %v83 = vld [vmem:[#allocation5 + $0xc0] sm:$0xff]
    %v84 = vld [vmem:[#allocation5 + $0xc8] sm:$0xff]
    %v85 = vld [vmem:[#allocation5 + $0xd0] sm:$0xff]
    %v86 = vld [vmem:[#allocation5 + $0xd8] sm:$0xff]
    %v87 = vld [vmem:[#allocation5 + $0xe0] sm:$0xff]
    %v88 = vld [vmem:[#allocation5 + $0xe8] sm:$0xff]
    %v89 = vld [vmem:[#allocation5 + $0xf0] sm:$0xff]
    %v90 = vld [vmem:[#allocation5 + $0xf8] sm:$0xff]
    %v91 = vld [vmem:[#allocation5 + $0x100] sm:$0xff]
    %v92 = vld [vmem:[#allocation5 + $0x108] sm:$0xff]
    %v93 = vld [vmem:[#allocation5 + $0x110] sm:$0xff]
    %v94 = vld [vmem:[#allocation5 + $0x118] sm:$0xff]
    %v95 = vld [vmem:[#allocation5 + $0x120] sm:$0xff]
    %v96 = vld [vmem:[#allocation5 + $0x128] sm:$0xff]
    %v97 = vld [vmem:[#allocation5 + $0x130] sm:$0xff]
    %v98 = vld [vmem:[#allocation5 + $0x138] sm:$0xff]
    %v99 = vld [vmem:[#allocation5 + $0x140] sm:$0xff]
    %v100 = vld [vmem:[#allocation5 + $0x148] sm:$0xff]
    %v101 = vld [vmem:[#allocation5 + $0x150] sm:$0xff]
    %v102 = vld [vmem:[#allocation5 + $0x158] sm:$0xff]
    %v103 = vld [vmem:[#allocation5 + $0x160] sm:$0xff]
    %v104 = vld [vmem:[#allocation5 + $0x168] sm:$0xff]
    %v105 = vld [vmem:[#allocation5 + $0x170] sm:$0xff]
    %v106 = vld [vmem:[#allocation5 + $0x178] sm:$0xff]
    %v107 = vld [vmem:[#allocation5 + $0x180] sm:$0xff]
    %v108 = vld [vmem:[#allocation5 + $0x188] sm:$0xff]
    %v109 = vld [vmem:[#allocation5 + $0x190] sm:$0xff]
    %v110 = vld [vmem:[#allocation5 + $0x198] sm:$0xff]
    %v111 = vld [vmem:[#allocation5 + $0x1a0] sm:$0xff]
    %v112 = vld [vmem:[#allocation5 + $0x1a8] sm:$0xff]
    %v113 = vld [vmem:[#allocation5 + $0x1b0] sm:$0xff]
    %v114 = vld [vmem:[#allocation5 + $0x1b8] sm:$0xff]
    %v115 = vld [vmem:[#allocation5 + $0x1c0] sm:$0xff]
    %v116 = vld [vmem:[#allocation5 + $0x1c8] sm:$0xff]
    %v117 = vld [vmem:[#allocation5 + $0x1d0] sm:$0xff]
    %v118 = vld [vmem:[#allocation5 + $0x1d8] sm:$0xff]
    %v119 = vld [vmem:[#allocation5 + $0x1e0] sm:$0xff]
    %v120 = vld [vmem:[#allocation5 + $0x1e8] sm:$0xff]
    %v121 = vld [vmem:[#allocation5 + $0x1f0] sm:$0xff]
    %v122 = vld [vmem:[#allocation5 + $0x1f8] sm:$0xff]
    %v123 = vld [vmem:[#allocation5 + $0x200] sm:$0xff]
    %v124 = vld [vmem:[#allocation5 + $0x208] sm:$0xff]
    %v125 = vld [vmem:[#allocation5 + $0x210] sm:$0xff]
    %v126 = vld [vmem:[#allocation5 + $0x218] sm:$0xff]
    %v127 = vld [vmem:[#allocation5 + $0x220] sm:$0xff]
    %v128 = vld [vmem:[#allocation5 + $0x228] sm:$0xff]
    %v129 = vld [vmem:[#allocation5 + $0x230] sm:$0xff]
    %v130 = vld [vmem:[#allocation5 + $0x238] sm:$0xff]
    %v131 = vld [vmem:[#allocation5 + $0x240] sm:$0xff]
    %v132 = vld [vmem:[#allocation5 + $0x248] sm:$0xff]
    %v133 = vld [vmem:[#allocation5 + $0x250] sm:$0xff]
    %v134 = vld [vmem:[#allocation5 + $0x258] sm:$0xff]
    %v135 = vld [vmem:[#allocation5 + $0x260] sm:$0xff]
    %v136 = vld [vmem:[#allocation5 + $0x268] sm:$0xff]
    %v137 = vld [vmem:[#allocation5 + $0x270] sm:$0xff]
    %v138 = vld [vmem:[#allocation5 + $0x278] sm:$0xff]
    %v139 = vld [vmem:[#allocation5 + $0x280] sm:$0xff]
    %v140 = vld [vmem:[#allocation5 + $0x288] sm:$0xff]
    %v141 = vld [vmem:[#allocation5 + $0x290] sm:$0xff]
    %v142 = vld [vmem:[#allocation5 + $0x298] sm:$0xff]
    %v143 = vld [vmem:[#allocation5 + $0x2a0] sm:$0xff]
    %v144 = vld [vmem:[#allocation5 + $0x2a8] sm:$0xff]
    %v145 = vld [vmem:[#allocation5 + $0x2b0] sm:$0xff]
    %v146 = vld [vmem:[#allocation5 + $0x2b8] sm:$0xff]
    %v147 = vld [vmem:[#allocation5 + $0x2c0] sm:$0xff]
    %v148 = vld [vmem:[#allocation5 + $0x2c8] sm:$0xff]
    %v149 = vld [vmem:[#allocation5 + $0x2d0] sm:$0xff]
    %v150 = vld [vmem:[#allocation5 + $0x2d8] sm:$0xff]
    %v151 = vld [vmem:[#allocation5 + $0x2e0] sm:$0xff]
    %v152 = vld [vmem:[#allocation5 + $0x2e8] sm:$0xff]
    %v153 = vld [vmem:[#allocation5 + $0x2f0] sm:$0xff]
    %v154 = vld [vmem:[#allocation5 + $0x2f8] sm:$0xff]
    %v155 = vld [vmem:[#allocation5 + $0x300] sm:$0xff]
    %v156 = vld [vmem:[#allocation5 + $0x308] sm:$0xff]
    %v157 = vld [vmem:[#allocation5 + $0x310] sm:$0xff]
    %v158 = vld [vmem:[#allocation5 + $0x318] sm:$0xff]
    %v159 = vld [vmem:[#allocation5 + $0x320] sm:$0xff]
    %v160 = vld [vmem:[#allocation5 + $0x328] sm:$0xff]
    %v161 = vld [vmem:[#allocation5 + $0x330] sm:$0xff]
    %v162 = vld [vmem:[#allocation5 + $0x338] sm:$0xff]
    %v163 = vld [vmem:[#allocation5 + $0x340] sm:$0xff]
    %v164 = vld [vmem:[#allocation5 + $0x348] sm:$0xff]
    %v165 = vld [vmem:[#allocation5 + $0x350] sm:$0xff]
    %v166 = vld [vmem:[#allocation5 + $0x358] sm:$0xff]
    %v167 = vld [vmem:[#allocation5 + $0x360] sm:$0xff]
    %v168 = vld [vmem:[#allocation5 + $0x368] sm:$0xff]
    %v169 = vld [vmem:[#allocation5 + $0x370] sm:$0xff]
    %v170 = vld [vmem:[#allocation5 + $0x378] sm:$0xff]
    %v171 = vld [vmem:[#allocation5 + $0x380] sm:$0xff]
    %v172 = vld [vmem:[#allocation5 + $0x388] sm:$0xff]
    %v173 = vld [vmem:[#allocation5 + $0x390] sm:$0xff]
    %v174 = vld [vmem:[#allocation5 + $0x398] sm:$0xff]
    %v175 = vld [vmem:[#allocation5 + $0x3a0] sm:$0xff]
    %v176 = vld [vmem:[#allocation5 + $0x3a8] sm:$0xff]
    %v177 = vld [vmem:[#allocation5 + $0x3b0] sm:$0xff]
    %v178 = vld [vmem:[#allocation5 + $0x3b8] sm:$0xff]
    %v179 = vld [vmem:[#allocation5 + $0x3c0] sm:$0xff]
    %v180 = vld [vmem:[#allocation5 + $0x3c8] sm:$0xff]
    %v181 = vld [vmem:[#allocation5 + $0x3d0] sm:$0xff]
    %v182 = vld [vmem:[#allocation5 + $0x3d8] sm:$0xff]
    %v183 = vld [vmem:[#allocation5 + $0x3e0] sm:$0xff]
    %v184 = vld [vmem:[#allocation5 + $0x3e8] sm:$0xff]
    %v185 = vld [vmem:[#allocation5 + $0x3f0] sm:$0xff]
    %v186 = vld [vmem:[#allocation5 + $0x3f8] sm:$0xff]
    %v187 = vld [vmem:[#allocation5 + $0x400] sm:$0xff]
    %v188 = vld [vmem:[#allocation5 + $0x408] sm:$0xff]
    %v189 = vld [vmem:[#allocation5 + $0x410] sm:$0xff]
    %v190 = vld [vmem:[#allocation5 + $0x418] sm:$0xff]
    %v191 = vld [vmem:[#allocation5 + $0x420] sm:$0xff]
    %v192 = vld [vmem:[#allocation5 + $0x428] sm:$0xff]
    %v193 = vld [vmem:[#allocation5 + $0x430] sm:$0xff]
    %v194 = vld [vmem:[#allocation5 + $0x438] sm:$0xff]
    %v195 = vld [vmem:[#allocation5 + $0x440] sm:$0xff]
    %v196 = vld [vmem:[#allocation5 + $0x448] sm:$0xff]
    %v197 = vld [vmem:[#allocation5 + $0x450] sm:$0xff]
    %v198 = vld [vmem:[#allocation5 + $0x458] sm:$0xff]
    %v199 = vld [vmem:[#allocation5 + $0x460] sm:$0xff]
    %v200 = vld [vmem:[#allocation5 + $0x468] sm:$0xff]
    %v201 = vld [vmem:[#allocation5 + $0x470] sm:$0xff]
    %v202 = vld [vmem:[#allocation5 + $0x478] sm:$0xff]
    %v203 = vld [vmem:[#allocation5 + $0x480] sm:$0xff]
    %v204 = vld [vmem:[#allocation5 + $0x488] sm:$0xff]
    %v205 = vld [vmem:[#allocation5 + $0x490] sm:$0xff]
    %v206 = vld [vmem:[#allocation5 + $0x498] sm:$0xff]
    %v207 = vld [vmem:[#allocation5 + $0x4a0] sm:$0xff]
    %v208 = vld [vmem:[#allocation5 + $0x4a8] sm:$0xff]
    %v209 = vld [vmem:[#allocation5 + $0x4b0] sm:$0xff]
    %v210 = vld [vmem:[#allocation5 + $0x4b8] sm:$0xff]
    %v211 = vld [vmem:[#allocation5 + $0x4c0] sm:$0xff]
    %v212 = vld [vmem:[#allocation5 + $0x4c8] sm:$0xff]
    %v213 = vld [vmem:[#allocation5 + $0x4d0] sm:$0xff]
    %v214 = vld [vmem:[#allocation5 + $0x4d8] sm:$0xff]
    %v215 = vld [vmem:[#allocation5 + $0x4e0] sm:$0xff]
    %v216 = vld [vmem:[#allocation5 + $0x4e8] sm:$0xff]
    %v217 = vld [vmem:[#allocation5 + $0x4f0] sm:$0xff]
    %v218 = vld [vmem:[#allocation5 + $0x4f8] sm:$0xff]
    %v219 = vld [vmem:[#allocation5 + $0x500] sm:$0xff]
    %v220 = vld [vmem:[#allocation5 + $0x508] sm:$0xff]
    %v221 = vld [vmem:[#allocation5 + $0x510] sm:$0xff]
    %v222 = vld [vmem:[#allocation5 + $0x518] sm:$0xff]
    %v223 = vld [vmem:[#allocation5 + $0x520] sm:$0xff]
    %v224 = vld [vmem:[#allocation5 + $0x528] sm:$0xff]
    %v225 = vld [vmem:[#allocation5 + $0x530] sm:$0xff]
    %v226 = vld [vmem:[#allocation5 + $0x538] sm:$0xff]
    %v227 = vld [vmem:[#allocation5 + $0x540] sm:$0xff]
    %v228 = vld [vmem:[#allocation5 + $0x548] sm:$0xff]
    %v229 = vld [vmem:[#allocation5 + $0x550] sm:$0xff]
    %v230 = vld [vmem:[#allocation5 + $0x558] sm:$0xff]
    %v231 = vld [vmem:[#allocation5 + $0x560] sm:$0xff]
    %v232 = vld [vmem:[#allocation5 + $0x568] sm:$0xff]
    %v233 = vld [vmem:[#allocation5 + $0x570] sm:$0xff]
    %v234 = vld [vmem:[#allocation5 + $0x578] sm:$0xff]
    %v235 = vld [vmem:[#allocation5 + $0x580] sm:$0xff]
    %v236 = vld [vmem:[#allocation5 + $0x588] sm:$0xff]
    %v237 = vld [vmem:[#allocation5 + $0x590] sm:$0xff]
    %v238 = vld [vmem:[#allocation5 + $0x598] sm:$0xff]
    %v239 = vld [vmem:[#allocation5 + $0x5a0] sm:$0xff]
    %v240 = vld [vmem:[#allocation5 + $0x5a8] sm:$0xff]
    %v241 = vld [vmem:[#allocation5 + $0x5b0] sm:$0xff]
    %v242 = vld [vmem:[#allocation5 + $0x5b8] sm:$0xff]
    %v243 = vld [vmem:[#allocation5 + $0x5c0] sm:$0xff]
    %v244 = vld [vmem:[#allocation5 + $0x5c8] sm:$0xff]
    %v245 = vld [vmem:[#allocation5 + $0x5d0] sm:$0xff]
    %v246 = vld [vmem:[#allocation5 + $0x5d8] sm:$0xff]
    %v247 = vld [vmem:[#allocation5 + $0x5e0] sm:$0xff]
    %v248 = vld [vmem:[#allocation5 + $0x5e8] sm:$0xff]
    %v249 = vld [vmem:[#allocation5 + $0x5f0] sm:$0xff]
    %v250 = vld [vmem:[#allocation5 + $0x5f8] sm:$0xff]
    %v251 = vld [vmem:[#allocation5 + $0x600] sm:$0xff]
    %v252 = vld [vmem:[#allocation5 + $0x608] sm:$0xff]
    %v253 = vld [vmem:[#allocation5 + $0x610] sm:$0xff]
    %v254 = vld [vmem:[#allocation5 + $0x618] sm:$0xff]
    %v255 = vld [vmem:[#allocation5 + $0x620] sm:$0xff]
    %v256 = vld [vmem:[#allocation5 + $0x628] sm:$0xff]
    %v257 = vld [vmem:[#allocation5 + $0x630] sm:$0xff]
    %v258 = vld [vmem:[#allocation5 + $0x638] sm:$0xff]
    %v259 = vld [vmem:[#allocation5 + $0x640] sm:$0xff]
    %v260 = vld [vmem:[#allocation5 + $0x648] sm:$0xff]
    %v261 = vld [vmem:[#allocation5 + $0x650] sm:$0xff]
    %v262 = vld [vmem:[#allocation5 + $0x658] sm:$0xff]
    %v263 = vld [vmem:[#allocation5 + $0x660] sm:$0xff]
    %v264 = vld [vmem:[#allocation5 + $0x668] sm:$0xff]
    %v265 = vld [vmem:[#allocation5 + $0x670] sm:$0xff]
    %v266 = vld [vmem:[#allocation5 + $0x678] sm:$0xff]
    %v267 = vld [vmem:[#allocation5 + $0x680] sm:$0xff]
    %v268 = vld [vmem:[#allocation5 + $0x688] sm:$0xff]
    %v269 = vld [vmem:[#allocation5 + $0x690] sm:$0xff]
    %v270 = vld [vmem:[#allocation5 + $0x698] sm:$0xff]
    %v271 = vld [vmem:[#allocation5 + $0x6a0] sm:$0xff]
    %v272 = vld [vmem:[#allocation5 + $0x6a8] sm:$0xff]
    %v273 = vld [vmem:[#allocation5 + $0x6b0] sm:$0xff]
    %v274 = vld [vmem:[#allocation5 + $0x6b8] sm:$0xff]
    %v275 = vld [vmem:[#allocation5 + $0x6c0] sm:$0xff]
    %v276 = vld [vmem:[#allocation5 + $0x6c8] sm:$0xff]
    %v277 = vld [vmem:[#allocation5 + $0x6d0] sm:$0xff]
    %v278 = vld [vmem:[#allocation5 + $0x6d8] sm:$0xff]
    %v279 = vld [vmem:[#allocation5 + $0x6e0] sm:$0xff]
    %v280 = vld [vmem:[#allocation5 + $0x6e8] sm:$0xff]
    %v281 = vld [vmem:[#allocation5 + $0x6f0] sm:$0xff]
    %v282 = vld [vmem:[#allocation5 + $0x6f8] sm:$0xff]
    %v283 = vld [vmem:[#allocation5 + $0x700] sm:$0xff]
    %v284 = vld [vmem:[#allocation5 + $0x708] sm:$0xff]
    %v285 = vld [vmem:[#allocation5 + $0x710] sm:$0xff]
    %v286 = vld [vmem:[#allocation5 + $0x718] sm:$0xff]
    %v287 = vld [vmem:[#allocation5 + $0x720] sm:$0xff]
    %v288 = vld [vmem:[#allocation5 + $0x728] sm:$0xff]
    %v289 = vld [vmem:[#allocation5 + $0x730] sm:$0xff]
    %v290 = vld [vmem:[#allocation5 + $0x738] sm:$0xff]
    %v291 = vld [vmem:[#allocation5 + $0x740] sm:$0xff]
    %v292 = vld [vmem:[#allocation5 + $0x748] sm:$0xff]
    %v293 = vld [vmem:[#allocation5 + $0x750] sm:$0xff]
    %v294 = vld [vmem:[#allocation5 + $0x758] sm:$0xff]
    %v295 = vld [vmem:[#allocation5 + $0x760] sm:$0xff]
    %v296 = vld [vmem:[#allocation5 + $0x768] sm:$0xff]
    %v297 = vld [vmem:[#allocation5 + $0x770] sm:$0xff]
    %v298 = vld [vmem:[#allocation5 + $0x778] sm:$0xff]
    %v299 = vld [vmem:[#allocation5 + $0x780] sm:$0xff]
    %v300 = vld [vmem:[#allocation5 + $0x788] sm:$0xff]
    %v301 = vld [vmem:[#allocation5 + $0x790] sm:$0xff]
    %v302 = vld [vmem:[#allocation5 + $0x798] sm:$0xff]
    %v303 = vld [vmem:[#allocation5 + $0x7a0] sm:$0xff]
    %v304 = vld [vmem:[#allocation5 + $0x7a8] sm:$0xff]
    %v305 = vld [vmem:[#allocation5 + $0x7b0] sm:$0xff]
    %v306 = vld [vmem:[#allocation5 + $0x7b8] sm:$0xff]
    %v307 = vld [vmem:[#allocation5 + $0x7c0] sm:$0xff]
    %v308 = vld [vmem:[#allocation5 + $0x7c8] sm:$0xff]
    %v309 = vld [vmem:[#allocation5 + $0x7d0] sm:$0xff]
    %v310 = vld [vmem:[#allocation5 + $0x7d8] sm:$0xff]
    %v311 = vld [vmem:[#allocation5 + $0x7e0] sm:$0xff]
    %v312 = vld [vmem:[#allocation5 + $0x7e8] sm:$0xff]
    %v313 = vld [vmem:[#allocation5 + $0x7f0] sm:$0xff]
    %v314 = vld [vmem:[#allocation5 + $0x7f8] sm:$0xff]
    %v315 = vld [vmem:[#allocation5 + $0x800] sm:$0xff]
    %v316 = vld [vmem:[#allocation5 + $0x808] sm:$0xff]
    %v317 = vld [vmem:[#allocation5 + $0x810] sm:$0xff]
    %v318 = vld [vmem:[#allocation5 + $0x818] sm:$0xff]
    %v319 = vld [vmem:[#allocation5 + $0x820] sm:$0xff]
    %v320 = vld [vmem:[#allocation5 + $0x828] sm:$0xff]
    %v321 = vld [vmem:[#allocation5 + $0x830] sm:$0xff]
    %v322 = vld [vmem:[#allocation5 + $0x838] sm:$0xff]
    %v323 = vld [vmem:[#allocation5 + $0x840] sm:$0xff]
    %v324 = vld [vmem:[#allocation5 + $0x848] sm:$0xff]
    %v325 = vld [vmem:[#allocation5 + $0x850] sm:$0xff]
    %v326 = vld [vmem:[#allocation5 + $0x858] sm:$0xff]
    %v327 = vld [vmem:[#allocation5 + $0x860] sm:$0xff]
    %v328 = vld [vmem:[#allocation5 + $0x868] sm:$0xff]
    %v329 = vld [vmem:[#allocation5 + $0x870] sm:$0xff]
    %v330 = vld [vmem:[#allocation5 + $0x878] sm:$0xff]
    %v331 = vld [vmem:[#allocation5 + $0x880] sm:$0xff]
    %v332 = vld [vmem:[#allocation5 + $0x888] sm:$0xff]
    %v333 = vld [vmem:[#allocation5 + $0x890] sm:$0xff]
    %v334 = vld [vmem:[#allocation5 + $0x898] sm:$0xff]
    %v335 = vld [vmem:[#allocation5 + $0x8a0] sm:$0xff]
    %v336 = vld [vmem:[#allocation5 + $0x8a8] sm:$0xff]
    %v337 = vld [vmem:[#allocation5 + $0x8b0] sm:$0xff]
    %v338 = vld [vmem:[#allocation5 + $0x8b8] sm:$0xff]
    %v339 = vld [vmem:[#allocation5 + $0x8c0] sm:$0xff]
    %v340 = vld [vmem:[#allocation5 + $0x8c8] sm:$0xff]
    %v341 = vld [vmem:[#allocation5 + $0x8d0] sm:$0xff]
    %v342 = vld [vmem:[#allocation5 + $0x8d8] sm:$0xff]
    %v343 = vld [vmem:[#allocation5 + $0x8e0] sm:$0xff]
    %v344 = vld [vmem:[#allocation5 + $0x8e8] sm:$0xff]
    %v345 = vld [vmem:[#allocation5 + $0x8f0] sm:$0xff]
    %v346 = vld [vmem:[#allocation5 + $0x8f8] sm:$0xff]
    %v347 = vld [vmem:[#allocation5 + $0x900] sm:$0xff]
    %v348 = vld [vmem:[#allocation5 + $0x908] sm:$0xff]
    %v349 = vld [vmem:[#allocation5 + $0x910] sm:$0xff]
    %v350 = vld [vmem:[#allocation5 + $0x918] sm:$0xff]
    %v351 = vld [vmem:[#allocation5 + $0x920] sm:$0xff]
    %v352 = vld [vmem:[#allocation5 + $0x928] sm:$0xff]
    %v353 = vld [vmem:[#allocation5 + $0x930] sm:$0xff]
    %v354 = vld [vmem:[#allocation5 + $0x938] sm:$0xff]
    %v355 = vld [vmem:[#allocation5 + $0x940] sm:$0xff]
    %v356 = vld [vmem:[#allocation5 + $0x948] sm:$0xff]
    %v357 = vld [vmem:[#allocation5 + $0x950] sm:$0xff]
    %v358 = vld [vmem:[#allocation5 + $0x958] sm:$0xff]
    %v359 = vld [vmem:[#allocation5 + $0x960] sm:$0xff]
    %v360 = vld [vmem:[#allocation5 + $0x968] sm:$0xff]
    %v361 = vld [vmem:[#allocation5 + $0x970] sm:$0xff]
    %v362 = vld [vmem:[#allocation5 + $0x978] sm:$0xff]
    %v363 = vld [vmem:[#allocation5 + $0x980] sm:$0xff]
    %v364 = vld [vmem:[#allocation5 + $0x988] sm:$0xff]
    %v365 = vld [vmem:[#allocation5 + $0x990] sm:$0xff]
    %v366 = vld [vmem:[#allocation5 + $0x998] sm:$0xff]
    %v367 = vld [vmem:[#allocation5 + $0x9a0] sm:$0xff]
    %v368 = vld [vmem:[#allocation5 + $0x9a8] sm:$0xff]
    %v369 = vld [vmem:[#allocation5 + $0x9b0] sm:$0xff]
    %v370 = vld [vmem:[#allocation5 + $0x9b8] sm:$0xff]
    %v371 = vld [vmem:[#allocation5 + $0x9c0] sm:$0xff]
    %v372 = vld [vmem:[#allocation5 + $0x9c8] sm:$0xff]
    %v373 = vld [vmem:[#allocation5 + $0x9d0] sm:$0xff]
    %v374 = vld [vmem:[#allocation5 + $0x9d8] sm:$0xff]
    %v375 = vld [vmem:[#allocation5 + $0x9e0] sm:$0xff]
    %v376 = vld [vmem:[#allocation5 + $0x9e8] sm:$0xff]
    %v377 = vld [vmem:[#allocation5 + $0x9f0] sm:$0xff]
    %v378 = vld [vmem:[#allocation5 + $0x9f8] sm:$0xff]
    %v379 = vld [vmem:[#allocation5 + $0xa00] sm:$0xff]
    %v380 = vld [vmem:[#allocation5 + $0xa08] sm:$0xff]
    %v381 = vld [vmem:[#allocation5 + $0xa10] sm:$0xff]
    %v382 = vld [vmem:[#allocation5 + $0xa18] sm:$0xff]
    %v383 = vld [vmem:[#allocation5 + $0xa20] sm:$0xff]
    %v384 = vld [vmem:[#allocation5 + $0xa28] sm:$0xff]
    %v385 = vld [vmem:[#allocation5 + $0xa30] sm:$0xff]
    %v386 = vld [vmem:[#allocation5 + $0xa38] sm:$0xff]
    %v387 = vld [vmem:[#allocation5 + $0xa40] sm:$0xff]
    %v388 = vld [vmem:[#allocation5 + $0xa48] sm:$0xff]
    %v389 = vld [vmem:[#allocation5 + $0xa50] sm:$0xff]
    %v390 = vld [vmem:[#allocation5 + $0xa58] sm:$0xff]
    %v391 = vld [vmem:[#allocation5 + $0xa60] sm:$0xff]
    %v392 = vld [vmem:[#allocation5 + $0xa68] sm:$0xff]
    %v393 = vld [vmem:[#allocation5 + $0xa70] sm:$0xff]
    %v394 = vld [vmem:[#allocation5 + $0xa78] sm:$0xff]
    %v395 = vld [vmem:[#allocation5 + $0xa80] sm:$0xff]
    %v396 = vld [vmem:[#allocation5 + $0xa88] sm:$0xff]
    %v397 = vld [vmem:[#allocation5 + $0xa90] sm:$0xff]
    %v398 = vld [vmem:[#allocation5 + $0xa98] sm:$0xff]
    %v399 = vld [vmem:[#allocation5 + $0xaa0] sm:$0xff]
    %v400 = vld [vmem:[#allocation5 + $0xaa8] sm:$0xff]
    %v401 = vld [vmem:[#allocation5 + $0xab0] sm:$0xff]
    %v402 = vld [vmem:[#allocation5 + $0xab8] sm:$0xff]
    %v403 = vld [vmem:[#allocation5 + $0xac0] sm:$0xff]
    %v404 = vld [vmem:[#allocation5 + $0xac8] sm:$0xff]
    %v405 = vld [vmem:[#allocation5 + $0xad0] sm:$0xff]
    %v406 = vld [vmem:[#allocation5 + $0xad8] sm:$0xff]
    %v407 = vld [vmem:[#allocation5 + $0xae0] sm:$0xff]
    %v408 = vld [vmem:[#allocation5 + $0xae8] sm:$0xff]
    %v409 = vld [vmem:[#allocation5 + $0xaf0] sm:$0xff]
    %v410 = vld [vmem:[#allocation5 + $0xaf8] sm:$0xff]
    %v411 = vld [vmem:[#allocation5 + $0xb00] sm:$0xff]
    %v412 = vld [vmem:[#allocation5 + $0xb08] sm:$0xff]
    %v413 = vld [vmem:[#allocation5 + $0xb10] sm:$0xff]
    %v414 = vld [vmem:[#allocation5 + $0xb18] sm:$0xff]
    %v415 = vld [vmem:[#allocation5 + $0xb20] sm:$0xff]
    %v416 = vld [vmem:[#allocation5 + $0xb28] sm:$0xff]
    %v417 = vld [vmem:[#allocation5 + $0xb30] sm:$0xff]
    %v418 = vld [vmem:[#allocation5 + $0xb38] sm:$0xff]
    %v419 = vld [vmem:[#allocation5 + $0xb40] sm:$0xff]
    %v420 = vld [vmem:[#allocation5 + $0xb48] sm:$0xff]
    %v421 = vld [vmem:[#allocation5 + $0xb50] sm:$0xff]
    %v422 = vld [vmem:[#allocation5 + $0xb58] sm:$0xff]
    %v423 = vld [vmem:[#allocation5 + $0xb60] sm:$0xff]
    %v424 = vld [vmem:[#allocation5 + $0xb68] sm:$0xff]
    %v425 = vld [vmem:[#allocation5 + $0xb70] sm:$0xff]
    %v426 = vld [vmem:[#allocation5 + $0xb78] sm:$0xff]
    %v427 = vld [vmem:[#allocation5 + $0xb80] sm:$0xff]
    %v428 = vld [vmem:[#allocation5 + $0xb88] sm:$0xff]
    %v429 = vld [vmem:[#allocation5 + $0xb90] sm:$0xff]
    %v430 = vld [vmem:[#allocation5 + $0xb98] sm:$0xff]
    %v431 = vld [vmem:[#allocation5 + $0xba0] sm:$0xff]
    %v432 = vld [vmem:[#allocation5 + $0xba8] sm:$0xff]
    %v433 = vld [vmem:[#allocation5 + $0xbb0] sm:$0xff]
    %v434 = vld [vmem:[#allocation5 + $0xbb8] sm:$0xff]
    %v435 = vld [vmem:[#allocation5 + $0xbc0] sm:$0xff]
    %v436 = vld [vmem:[#allocation5 + $0xbc8] sm:$0xff]
    %v437 = vld [vmem:[#allocation5 + $0xbd0] sm:$0xff]
    %v438 = vld [vmem:[#allocation5 + $0xbd8] sm:$0xff]
    %v439 = vld [vmem:[#allocation5 + $0xbe0] sm:$0xff]
    %v440 = vld [vmem:[#allocation5 + $0xbe8] sm:$0xff]
    %v441 = vld [vmem:[#allocation5 + $0xbf0] sm:$0xff]
    %v442 = vld [vmem:[#allocation5 + $0xbf8] sm:$0xff]
    %v443 = vld [vmem:[#allocation5 + $0xc00] sm:$0xff]
    %v444 = vld [vmem:[#allocation5 + $0xc08] sm:$0xff]
    %v445 = vld [vmem:[#allocation5 + $0xc10] sm:$0xff]
    %v446 = vld [vmem:[#allocation5 + $0xc18] sm:$0xff]
    %v447 = vld [vmem:[#allocation5 + $0xc20] sm:$0xff]
    %v448 = vld [vmem:[#allocation5 + $0xc28] sm:$0xff]
    %v449 = vld [vmem:[#allocation5 + $0xc30] sm:$0xff]
    %v450 = vld [vmem:[#allocation5 + $0xc38] sm:$0xff]
    %v451 = vld [vmem:[#allocation5 + $0xc40] sm:$0xff]
    %v452 = vld [vmem:[#allocation5 + $0xc48] sm:$0xff]
    %v453 = vld [vmem:[#allocation5 + $0xc50] sm:$0xff]
    %v454 = vld [vmem:[#allocation5 + $0xc58] sm:$0xff]
    %v455 = vld [vmem:[#allocation5 + $0xc60] sm:$0xff]
    %v456 = vld [vmem:[#allocation5 + $0xc68] sm:$0xff]
    %v457 = vld [vmem:[#allocation5 + $0xc70] sm:$0xff]
    %v458 = vld [vmem:[#allocation5 + $0xc78] sm:$0xff]
    %v459 = vld [vmem:[#allocation5 + $0xc80] sm:$0xff]
    %v460 = vld [vmem:[#allocation5 + $0xc88] sm:$0xff]
    %v461 = vld [vmem:[#allocation5 + $0xc90] sm:$0xff]
    %v462 = vld [vmem:[#allocation5 + $0xc98] sm:$0xff]
    %v463 = vld [vmem:[#allocation5 + $0xca0] sm:$0xff]
    %v464 = vld [vmem:[#allocation5 + $0xca8] sm:$0xff]
    %v465 = vld [vmem:[#allocation5 + $0xcb0] sm:$0xff]
    %v466 = vld [vmem:[#allocation5 + $0xcb8] sm:$0xff]
    %v467 = vld [vmem:[#allocation5 + $0xcc0] sm:$0xff]
    %v468 = vld [vmem:[#allocation5 + $0xcc8] sm:$0xff]
    %v469 = vld [vmem:[#allocation5 + $0xcd0] sm:$0xff]
    %v470 = vld [vmem:[#allocation5 + $0xcd8] sm:$0xff]
    %v471 = vld [vmem:[#allocation5 + $0xce0] sm:$0xff]
    %v472 = vld [vmem:[#allocation5 + $0xce8] sm:$0xff]
    %v473 = vld [vmem:[#allocation5 + $0xcf0] sm:$0xff]
    %v474 = vld [vmem:[#allocation5 + $0xcf8] sm:$0xff]
    %v475 = vld [vmem:[#allocation5 + $0xd00] sm:$0xff]
    %v476 = vld [vmem:[#allocation5 + $0xd08] sm:$0xff]
    %v477 = vld [vmem:[#allocation5 + $0xd10] sm:$0xff]
    %v478 = vld [vmem:[#allocation5 + $0xd18] sm:$0xff]
    %v479 = vld [vmem:[#allocation5 + $0xd20] sm:$0xff]
    %v480 = vld [vmem:[#allocation5 + $0xd28] sm:$0xff]
    %v481 = vld [vmem:[#allocation5 + $0xd30] sm:$0xff]
    %v482 = vld [vmem:[#allocation5 + $0xd38] sm:$0xff]
    %v483 = vld [vmem:[#allocation5 + $0xd40] sm:$0xff]
    %v484 = vld [vmem:[#allocation5 + $0xd48] sm:$0xff]
    %v485 = vld [vmem:[#allocation5 + $0xd50] sm:$0xff]
    %v486 = vld [vmem:[#allocation5 + $0xd58] sm:$0xff]
    %v487 = vld [vmem:[#allocation5 + $0xd60] sm:$0xff]
    %v488 = vld [vmem:[#allocation5 + $0xd68] sm:$0xff]
    %v489 = vld [vmem:[#allocation5 + $0xd70] sm:$0xff]
    %v490 = vld [vmem:[#allocation5 + $0xd78] sm:$0xff]
    %v491 = vld [vmem:[#allocation5 + $0xd80] sm:$0xff]
    %v492 = vld [vmem:[#allocation5 + $0xd88] sm:$0xff]
    %v493 = vld [vmem:[#allocation5 + $0xd90] sm:$0xff]
    %v494 = vld [vmem:[#allocation5 + $0xd98] sm:$0xff]
    %v495 = vld [vmem:[#allocation5 + $0xda0] sm:$0xff]
    %v496 = vld [vmem:[#allocation5 + $0xda8] sm:$0xff]
    %v497 = vld [vmem:[#allocation5 + $0xdb0] sm:$0xff]
    %v498 = vld [vmem:[#allocation5 + $0xdb8] sm:$0xff]
    %v499 = vld [vmem:[#allocation5 + $0xdc0] sm:$0xff]
    %v500 = vld [vmem:[#allocation5 + $0xdc8] sm:$0xff]
    %v501 = vld [vmem:[#allocation5 + $0xdd0] sm:$0xff]
    %v502 = vld [vmem:[#allocation5 + $0xdd8] sm:$0xff]
    %v503 = vld [vmem:[#allocation5 + $0xde0] sm:$0xff]
    %v504 = vld [vmem:[#allocation5 + $0xde8] sm:$0xff]
    %v505 = vld [vmem:[#allocation5 + $0xdf0] sm:$0xff]
    %v506 = vld [vmem:[#allocation5 + $0xdf8] sm:$0xff]
    %v507 = vld [vmem:[#allocation5 + $0xe00] sm:$0xff]
    %v508 = vld [vmem:[#allocation5 + $0xe08] sm:$0xff]
    %v509 = vld [vmem:[#allocation5 + $0xe10] sm:$0xff]
    %v510 = vld [vmem:[#allocation5 + $0xe18] sm:$0xff]
    %v511 = vld [vmem:[#allocation5 + $0xe20] sm:$0xff]
    %v512 = vld [vmem:[#allocation5 + $0xe28] sm:$0xff]
    %v513 = vld [vmem:[#allocation5 + $0xe30] sm:$0xff]
    %v514 = vld [vmem:[#allocation5 + $0xe38] sm:$0xff]
    %v515 = vld [vmem:[#allocation5 + $0xe40] sm:$0xff]
    %v516 = vld [vmem:[#allocation5 + $0xe48] sm:$0xff]
    %v517 = vld [vmem:[#allocation5 + $0xe50] sm:$0xff]
    %v518 = vld [vmem:[#allocation5 + $0xe58] sm:$0xff]
    %v519 = vld [vmem:[#allocation5 + $0xe60] sm:$0xff]
    %v520 = vld [vmem:[#allocation5 + $0xe68] sm:$0xff]
    %v521 = vld [vmem:[#allocation5 + $0xe70] sm:$0xff]
    %v522 = vld [vmem:[#allocation5 + $0xe78] sm:$0xff]
    %v523 = vld [vmem:[#allocation5 + $0xe80] sm:$0xff]
    %v524 = vld [vmem:[#allocation5 + $0xe88] sm:$0xff]
    %v525 = vld [vmem:[#allocation5 + $0xe90] sm:$0xff]
    %v526 = vld [vmem:[#allocation5 + $0xe98] sm:$0xff]
    %v527 = vld [vmem:[#allocation5 + $0xea0] sm:$0xff]
    %v528 = vld [vmem:[#allocation5 + $0xea8] sm:$0xff]
    %v529 = vld [vmem:[#allocation5 + $0xeb0] sm:$0xff]
    %v530 = vld [vmem:[#allocation5 + $0xeb8] sm:$0xff]
    %v531 = vld [vmem:[#allocation5 + $0xec0] sm:$0xff]
    %v532 = vld [vmem:[#allocation5 + $0xec8] sm:$0xff]
    %v533 = vld [vmem:[#allocation5 + $0xed0] sm:$0xff]
    %v534 = vld [vmem:[#allocation5 + $0xed8] sm:$0xff]
    %v535 = vld [vmem:[#allocation5 + $0xee0] sm:$0xff]
    %v536 = vld [vmem:[#allocation5 + $0xee8] sm:$0xff]
    %v537 = vld [vmem:[#allocation5 + $0xef0] sm:$0xff]
    %v538 = vld [vmem:[#allocation5 + $0xef8] sm:$0xff]
    %v539 = vld [vmem:[#allocation5 + $0xf00] sm:$0xff]
    %v540 = vld [vmem:[#allocation5 + $0xf08] sm:$0xff]
    %v541 = vld [vmem:[#allocation5 + $0xf10] sm:$0xff]
    %v542 = vld [vmem:[#allocation5 + $0xf18] sm:$0xff]
    %v543 = vld [vmem:[#allocation5 + $0xf20] sm:$0xff]
    %v544 = vld [vmem:[#allocation5 + $0xf28] sm:$0xff]
    %v545 = vld [vmem:[#allocation5 + $0xf30] sm:$0xff]
    %v546 = vld [vmem:[#allocation5 + $0xf38] sm:$0xff]
    %v547 = vld [vmem:[#allocation5 + $0xf40] sm:$0xff]
    %v548 = vld [vmem:[#allocation5 + $0xf48] sm:$0xff]
    %v549 = vld [vmem:[#allocation5 + $0xf50] sm:$0xff]
    %v550 = vld [vmem:[#allocation5 + $0xf58] sm:$0xff]
    %v551 = vld [vmem:[#allocation5 + $0xf60] sm:$0xff]
    %v552 = vld [vmem:[#allocation5 + $0xf68] sm:$0xff]
    %v553 = vld [vmem:[#allocation5 + $0xf70] sm:$0xff]
    %v554 = vld [vmem:[#allocation5 + $0xf78] sm:$0xff]
    %v555 = vld [vmem:[#allocation5 + $0xf80] sm:$0xff]
    %v556 = vld [vmem:[#allocation5 + $0xf88] sm:$0xff]
    %v557 = vld [vmem:[#allocation5 + $0xf90] sm:$0xff]
    %v558 = vld [vmem:[#allocation5 + $0xf98] sm:$0xff]
    %v559 = vld [vmem:[#allocation5 + $0xfa0] sm:$0xff]
    %v560 = vld [vmem:[#allocation5 + $0xfa8] sm:$0xff]
    %v561 = vld [vmem:[#allocation5 + $0xfb0] sm:$0xff]
    %v562 = vld [vmem:[#allocation5 + $0xfb8] sm:$0xff]
    %v563 = vld [vmem:[#allocation5 + $0xfc0] sm:$0xff]
    %v564 = vld [vmem:[#allocation5 + $0xfc8] sm:$0xff]
    %v565 = vld [vmem:[#allocation5 + $0xfd0] sm:$0xff]
    %v566 = vld [vmem:[#allocation5 + $0xfd8] sm:$0xff]
    %v567 = vld [vmem:[#allocation5 + $0xfe0] sm:$0xff]
    %v568 = vld [vmem:[#allocation5 + $0xfe8] sm:$0xff]
    %v569 = vld [vmem:[#allocation5 + $0xff0] sm:$0xff]
    %v570 = vld [vmem:[#allocation5 + $0xff8] sm:$0xff]
    %v571 = vld [vmem:[#allocation5 + $0x1000] sm:$0xff]
    %v572 = vld [vmem:[#allocation5 + $0x1008] sm:$0xff]
    %v573 = vld [vmem:[#allocation5 + $0x1010] sm:$0xff]
    %v574 = vld [vmem:[#allocation5 + $0x1018] sm:$0xff]
    %v575 = vld [vmem:[#allocation5 + $0x1020] sm:$0xff]
    %v576 = vld [vmem:[#allocation5 + $0x1028] sm:$0xff]
    %v577 = vld [vmem:[#allocation5 + $0x1030] sm:$0xff]
    %v578 = vld [vmem:[#allocation5 + $0x1038] sm:$0xff]
    %v579 = vld [vmem:[#allocation5 + $0x1040] sm:$0xff]
    %v580 = vld [vmem:[#allocation5 + $0x1048] sm:$0xff]
    %v581 = vld [vmem:[#allocation5 + $0x1050] sm:$0xff]
    %v582 = vld [vmem:[#allocation5 + $0x1058] sm:$0xff]
    %v583 = vld [vmem:[#allocation5 + $0x1060] sm:$0xff]
    %v584 = vld [vmem:[#allocation5 + $0x1068] sm:$0xff]
    %v585 = vld [vmem:[#allocation5 + $0x1070] sm:$0xff]
    %v586 = vld [vmem:[#allocation5 + $0x1078] sm:$0xff]
    %v587 = vld [vmem:[#allocation5 + $0x1080] sm:$0xff]
    %v588 = vld [vmem:[#allocation5 + $0x1088] sm:$0xff]
    %v589 = vld [vmem:[#allocation5 + $0x1090] sm:$0xff]
    %v590 = vld [vmem:[#allocation5 + $0x1098] sm:$0xff]
    %v591 = vld [vmem:[#allocation5 + $0x10a0] sm:$0xff]
    %v592 = vld [vmem:[#allocation5 + $0x10a8] sm:$0xff]
    %v593 = vld [vmem:[#allocation5 + $0x10b0] sm:$0xff]
    %v594 = vld [vmem:[#allocation5 + $0x10b8] sm:$0xff]
    %v595 = vld [vmem:[#allocation5 + $0x10c0] sm:$0xff]
    %v596 = vld [vmem:[#allocation5 + $0x10c8] sm:$0xff]
    %v597 = vld [vmem:[#allocation5 + $0x10d0] sm:$0xff]
    %v598 = vld [vmem:[#allocation5 + $0x10d8] sm:$0xff]
    %v599 = vld [vmem:[#allocation5 + $0x10e0] sm:$0xff]
    %v600 = vld [vmem:[#allocation5 + $0x10e8] sm:$0xff]
    %v601 = vld [vmem:[#allocation5 + $0x10f0] sm:$0xff]
    %v602 = vld [vmem:[#allocation5 + $0x10f8] sm:$0xff]
    %v603 = vld [vmem:[#allocation5 + $0x1100] sm:$0xff]
    %v604 = vld [vmem:[#allocation5 + $0x1108] sm:$0xff]
    %v605 = vld [vmem:[#allocation5 + $0x1110] sm:$0xff]
    %v606 = vld [vmem:[#allocation5 + $0x1118] sm:$0xff]
    %v607 = vld [vmem:[#allocation5 + $0x1120] sm:$0xff]
    %v608 = vld [vmem:[#allocation5 + $0x1128] sm:$0xff]
    %v609 = vld [vmem:[#allocation5 + $0x1130] sm:$0xff]
    %v610 = vld [vmem:[#allocation5 + $0x1138] sm:$0xff]
    %v611 = vld [vmem:[#allocation5 + $0x1140] sm:$0xff]
    %v612 = vld [vmem:[#allocation5 + $0x1148] sm:$0xff]
    %v613 = vld [vmem:[#allocation5 + $0x1150] sm:$0xff]
    %v614 = vld [vmem:[#allocation5 + $0x1158] sm:$0xff]
    %v615 = vld [vmem:[#allocation5 + $0x1160] sm:$0xff]
    %v616 = vld [vmem:[#allocation5 + $0x1168] sm:$0xff]
    %v617 = vld [vmem:[#allocation5 + $0x1170] sm:$0xff]
    %v618 = vld [vmem:[#allocation5 + $0x1178] sm:$0xff]
    %v619 = vld [vmem:[#allocation5 + $0x1180] sm:$0xff]
    %v620 = vld [vmem:[#allocation5 + $0x1188] sm:$0xff]
    %v621 = vld [vmem:[#allocation5 + $0x1190] sm:$0xff]
    %v622 = vld [vmem:[#allocation5 + $0x1198] sm:$0xff]
    %v623 = vld [vmem:[#allocation5 + $0x11a0] sm:$0xff]
    %v624 = vld [vmem:[#allocation5 + $0x11a8] sm:$0xff]
    %v625 = vld [vmem:[#allocation5 + $0x11b0] sm:$0xff]
    %v626 = vld [vmem:[#allocation5 + $0x11b8] sm:$0xff]
    %v627 = vld [vmem:[#allocation5 + $0x11c0] sm:$0xff]
    %v628 = vld [vmem:[#allocation5 + $0x11c8] sm:$0xff]
    %v629 = vld [vmem:[#allocation5 + $0x11d0] sm:$0xff]
    %v630 = vld [vmem:[#allocation5 + $0x11d8] sm:$0xff]
    %v631 = vld [vmem:[#allocation5 + $0x11e0] sm:$0xff]
    %v632 = vld [vmem:[#allocation5 + $0x11e8] sm:$0xff]
    %v633 = vld [vmem:[#allocation5 + $0x11f0] sm:$0xff]
    %v634 = vld [vmem:[#allocation5 + $0x11f8] sm:$0xff]
    %v635 = vld [vmem:[#allocation5 + $0x1200] sm:$0xff]
    %v636 = vld [vmem:[#allocation5 + $0x1208] sm:$0xff]
    %v637 = vld [vmem:[#allocation5 + $0x1210] sm:$0xff]
    %v638 = vld [vmem:[#allocation5 + $0x1218] sm:$0xff]
    %v639 = vld [vmem:[#allocation5 + $0x1220] sm:$0xff]
    %v640 = vld [vmem:[#allocation5 + $0x1228] sm:$0xff]
    %v641 = vld [vmem:[#allocation5 + $0x1230] sm:$0xff]
    %v642 = vld [vmem:[#allocation5 + $0x1238] sm:$0xff]
    %v643 = vld [vmem:[#allocation5 + $0x1240] sm:$0xff]
    %v644 = vld [vmem:[#allocation5 + $0x1248] sm:$0xff]
    %v645 = vld [vmem:[#allocation5 + $0x1250] sm:$0xff]
    %v646 = vld [vmem:[#allocation5 + $0x1258] sm:$0xff]
    %v647 = vld [vmem:[#allocation5 + $0x1260] sm:$0xff]
    %v648 = vld [vmem:[#allocation5 + $0x1268] sm:$0xff]
    %v649 = vld [vmem:[#allocation5 + $0x1270] sm:$0xff]
    %v650 = vld [vmem:[#allocation5 + $0x1278] sm:$0xff]
    %v651 = vld [vmem:[#allocation5 + $0x1280] sm:$0xff]
    %v652 = vld [vmem:[#allocation5 + $0x1288] sm:$0xff]
    %v653 = vld [vmem:[#allocation5 + $0x1290] sm:$0xff]
    %v654 = vld [vmem:[#allocation5 + $0x1298] sm:$0xff]
    %v655 = vld [vmem:[#allocation5 + $0x12a0] sm:$0xff]
    %v656 = vld [vmem:[#allocation5 + $0x12a8] sm:$0xff]
    %v657 = vld [vmem:[#allocation5 + $0x12b0] sm:$0xff]
    %v658 = vld [vmem:[#allocation5 + $0x12b8] sm:$0xff]
    %v659 = vld [vmem:[#allocation5 + $0x12c0] sm:$0xff]
    %v660 = vld [vmem:[#allocation5 + $0x12c8] sm:$0xff]
    %v661 = vld [vmem:[#allocation5 + $0x12d0] sm:$0xff]
    %v662 = vld [vmem:[#allocation5 + $0x12d8] sm:$0xff]
    %v663 = vld [vmem:[#allocation5 + $0x12e0] sm:$0xff]
    %v664 = vld [vmem:[#allocation5 + $0x12e8] sm:$0xff]
    %v665 = vld [vmem:[#allocation5 + $0x12f0] sm:$0xff]
    %v666 = vld [vmem:[#allocation5 + $0x12f8] sm:$0xff]
    %v667 = vld [vmem:[#allocation5 + $0x1300] sm:$0xff]
    %v668 = vld [vmem:[#allocation5 + $0x1308] sm:$0xff]
    %v669 = vld [vmem:[#allocation5 + $0x1310] sm:$0xff]
    %v670 = vld [vmem:[#allocation5 + $0x1318] sm:$0xff]
    %v671 = vld [vmem:[#allocation5 + $0x1320] sm:$0xff]
    %v672 = vld [vmem:[#allocation5 + $0x1328] sm:$0xff]
    %v673 = vld [vmem:[#allocation5 + $0x1330] sm:$0xff]
    %v674 = vld [vmem:[#allocation5 + $0x1338] sm:$0xff]
    %v675 = vld [vmem:[#allocation5 + $0x1340] sm:$0xff]
    %v676 = vld [vmem:[#allocation5 + $0x1348] sm:$0xff]
    %v677 = vld [vmem:[#allocation5 + $0x1350] sm:$0xff]
    %v678 = vld [vmem:[#allocation5 + $0x1358] sm:$0xff]
    %v679 = vld [vmem:[#allocation5 + $0x1360] sm:$0xff]
    %v680 = vld [vmem:[#allocation5 + $0x1368] sm:$0xff]
    %v681 = vld [vmem:[#allocation5 + $0x1370] sm:$0xff]
    %v682 = vld [vmem:[#allocation5 + $0x1378] sm:$0xff]
    %v683 = vld [vmem:[#allocation5 + $0x1380] sm:$0xff]
    %v684 = vld [vmem:[#allocation5 + $0x1388] sm:$0xff]
    %v685 = vld [vmem:[#allocation5 + $0x1390] sm:$0xff]
    %v686 = vld [vmem:[#allocation5 + $0x1398] sm:$0xff]
    %v687 = vld [vmem:[#allocation5 + $0x13a0] sm:$0xff]
    %v688 = vld [vmem:[#allocation5 + $0x13a8] sm:$0xff]
    %v689 = vld [vmem:[#allocation5 + $0x13b0] sm:$0xff]
    %v690 = vld [vmem:[#allocation5 + $0x13b8] sm:$0xff]
    %v691 = vld [vmem:[#allocation5 + $0x13c0] sm:$0xff]
    %v692 = vld [vmem:[#allocation5 + $0x13c8] sm:$0xff]
    %v693 = vld [vmem:[#allocation5 + $0x13d0] sm:$0xff]
    %v694 = vld [vmem:[#allocation5 + $0x13d8] sm:$0xff]
    %v695 = vld [vmem:[#allocation5 + $0x13e0] sm:$0xff]
    %v696 = vld [vmem:[#allocation5 + $0x13e8] sm:$0xff]
    %v697 = vld [vmem:[#allocation5 + $0x13f0] sm:$0xff]
    %v698 = vld [vmem:[#allocation5 + $0x13f8] sm:$0xff]
    %v699 = vld [vmem:[#allocation5 + $0x1400] sm:$0xff]
    %v700 = vld [vmem:[#allocation5 + $0x1408] sm:$0xff]
    %v701 = vld [vmem:[#allocation5 + $0x1410] sm:$0xff]
    %v702 = vld [vmem:[#allocation5 + $0x1418] sm:$0xff]
    %v703 = vld [vmem:[#allocation5 + $0x1420] sm:$0xff]
    %v704 = vld [vmem:[#allocation5 + $0x1428] sm:$0xff]
    %v705 = vld [vmem:[#allocation5 + $0x1430] sm:$0xff]
    %v706 = vld [vmem:[#allocation5 + $0x1438] sm:$0xff]
    %v707 = vld [vmem:[#allocation5 + $0x1440] sm:$0xff]
    %v708 = vld [vmem:[#allocation5 + $0x1448] sm:$0xff]
    %v709 = vld [vmem:[#allocation5 + $0x1450] sm:$0xff]
    %v710 = vld [vmem:[#allocation5 + $0x1458] sm:$0xff]
    %v711 = vld [vmem:[#allocation5 + $0x1460] sm:$0xff]
    %v712 = vld [vmem:[#allocation5 + $0x1468] sm:$0xff]
    %v713 = vld [vmem:[#allocation5 + $0x1470] sm:$0xff]
    %v714 = vld [vmem:[#allocation5 + $0x1478] sm:$0xff]
    %v715 = vld [vmem:[#allocation5 + $0x1480] sm:$0xff]
    %v716 = vld [vmem:[#allocation5 + $0x1488] sm:$0xff]
    %v717 = vld [vmem:[#allocation5 + $0x1490] sm:$0xff]
    %v718 = vld [vmem:[#allocation5 + $0x1498] sm:$0xff]
    %v719 = vld [vmem:[#allocation5 + $0x14a0] sm:$0xff]
    %v720 = vld [vmem:[#allocation5 + $0x14a8] sm:$0xff]
    %v721 = vld [vmem:[#allocation5 + $0x14b0] sm:$0xff]
    %v722 = vld [vmem:[#allocation5 + $0x14b8] sm:$0xff]
    %v723 = vld [vmem:[#allocation5 + $0x14c0] sm:$0xff]
    %v724 = vld [vmem:[#allocation5 + $0x14c8] sm:$0xff]
    %v725 = vld [vmem:[#allocation5 + $0x14d0] sm:$0xff]
    %v726 = vld [vmem:[#allocation5 + $0x14d8] sm:$0xff]
    %v727 = vld [vmem:[#allocation5 + $0x14e0] sm:$0xff]
    %v728 = vld [vmem:[#allocation5 + $0x14e8] sm:$0xff]
    %v729 = vld [vmem:[#allocation5 + $0x14f0] sm:$0xff]
    %v730 = vld [vmem:[#allocation5 + $0x14f8] sm:$0xff]
    %731 = vmatpush.msra.mxu0 %v689
    %732 = vmatpush.msra.mxu0 %v647
    %733 = vmatpush.msra.mxu0 %v605
    %734 = vmatpush.msra.mxu0 %v563
    %735 = vmatpush.msra.mxu0 %v521
    %736 = vmatpush.msra.mxu0 %v479
    %737 = vmatpush.msra.mxu0 %v437
    %738 = vmatpush.msra.mxu0 %v395
    %739 = vmatpush.msra.mxu0 %v353
    %740 = vmatpush.msra.mxu0 %v311
    %741 = vmatpush.msra.mxu0 %v269
    %742 = vmatpush.msra.mxu0 %v227
    %743 = vmatpush.msra.mxu0 %v185
    %744 = vmatpush.msra.mxu0 %v143
    %745 = vmatpush.msra.mxu0 %v101
    %746 = vmatpush.msra.mxu0 %v59
    %747 = vmatmul.f32.gmra.mxu0 %v58
    %v748 = vpop.f32.mrf.mxu0
    %v749 = vadd.f32 0.0, %v748
    %750 = vdwg.mxu0
    %751 = vmatpush.msra.mxu0 %v690
    %752 = vmatpush.msra.mxu0 %v648
    %753 = vmatpush.msra.mxu0 %v606
    %754 = vmatpush.msra.mxu0 %v564
    %755 = vmatpush.msra.mxu0 %v522
    %756 = vmatpush.msra.mxu0 %v480
    %757 = vmatpush.msra.mxu0 %v438
    %758 = vmatpush.msra.mxu0 %v396
    %759 = vmatpush.msra.mxu0 %v354
    %760 = vmatpush.msra.mxu0 %v312
    %761 = vmatpush.msra.mxu0 %v270
    %762 = vmatpush.msra.mxu0 %v228
    %763 = vmatpush.msra.mxu0 %v186
    %764 = vmatpush.msra.mxu0 %v144
    %765 = vmatpush.msra.mxu0 %v102
    %766 = vmatpush.msra.mxu0 %v60
    %767 = vmatmul.f32.gmra.mxu0 %v58
    %v768 = vpop.f32.mrf.mxu0
    %v769 = vadd.f32 0.0, %v768
    %770 = vdwg.mxu0
    %771 = vmatpush.msra.mxu0 %v691
    %772 = vmatpush.msra.mxu0 %v649
    %773 = vmatpush.msra.mxu0 %v607
    %774 = vmatpush.msra.mxu0 %v565
    %775 = vmatpush.msra.mxu0 %v523
    %776 = vmatpush.msra.mxu0 %v481
    %777 = vmatpush.msra.mxu0 %v439
    %778 = vmatpush.msra.mxu0 %v397
    %779 = vmatpush.msra.mxu0 %v355
    %780 = vmatpush.msra.mxu0 %v313
    %781 = vmatpush.msra.mxu0 %v271
    %782 = vmatpush.msra.mxu0 %v229
    %783 = vmatpush.msra.mxu0 %v187
    %784 = vmatpush.msra.mxu0 %v145
    %785 = vmatpush.msra.mxu0 %v103
    %786 = vmatpush.msra.mxu0 %v61
    %787 = vmatmul.f32.gmra.mxu0 %v58
    %v788 = vpop.f32.mrf.mxu0
    %v789 = vadd.f32 0.0, %v788
    %790 = vdwg.mxu0
    %791 = vmatpush.msra.mxu0 %v692
    %792 = vmatpush.msra.mxu0 %v650
    %793 = vmatpush.msra.mxu0 %v608
    %794 = vmatpush.msra.mxu0 %v566
    %795 = vmatpush.msra.mxu0 %v524
    %796 = vmatpush.msra.mxu0 %v482
    %797 = vmatpush.msra.mxu0 %v440
    %798 = vmatpush.msra.mxu0 %v398
    %799 = vmatpush.msra.mxu0 %v356
    %800 = vmatpush.msra.mxu0 %v314
    %801 = vmatpush.msra.mxu0 %v272
    %802 = vmatpush.msra.mxu0 %v230
    %803 = vmatpush.msra.mxu0 %v188
    %804 = vmatpush.msra.mxu0 %v146
    %805 = vmatpush.msra.mxu0 %v104
    %806 = vmatpush.msra.mxu0 %v62
    %807 = vmatmul.f32.gmra.mxu0 %v58
    %v808 = vpop.f32.mrf.mxu0
    %v809 = vadd.f32 0.0, %v808
    %810 = vdwg.mxu0
    %811 = vmatpush.msra.mxu0 %v693
    %812 = vmatpush.msra.mxu0 %v651
    %813 = vmatpush.msra.mxu0 %v609
    %814 = vmatpush.msra.mxu0 %v567
    %815 = vmatpush.msra.mxu0 %v525
    %816 = vmatpush.msra.mxu0 %v483
    %817 = vmatpush.msra.mxu0 %v441
    %818 = vmatpush.msra.mxu0 %v399
    %819 = vmatpush.msra.mxu0 %v357
    %820 = vmatpush.msra.mxu0 %v315
    %821 = vmatpush.msra.mxu0 %v273
    %822 = vmatpush.msra.mxu0 %v231
    %823 = vmatpush.msra.mxu0 %v189
    %824 = vmatpush.msra.mxu0 %v147
    %825 = vmatpush.msra.mxu0 %v105
    %826 = vmatpush.msra.mxu0 %v63
    %827 = vmatmul.f32.gmra.mxu0 %v58
    %v828 = vpop.f32.mrf.mxu0
    %v829 = vadd.f32 0.0, %v828
    %830 = vdwg.mxu0
    %831 = vmatpush.msra.mxu0 %v694
    %832 = vmatpush.msra.mxu0 %v652
    %833 = vmatpush.msra.mxu0 %v610
    %834 = vmatpush.msra.mxu0 %v568
    %835 = vmatpush.msra.mxu0 %v526
    %836 = vmatpush.msra.mxu0 %v484
    %837 = vmatpush.msra.mxu0 %v442
    %838 = vmatpush.msra.mxu0 %v400
    %839 = vmatpush.msra.mxu0 %v358
    %840 = vmatpush.msra.mxu0 %v316
    %841 = vmatpush.msra.mxu0 %v274
    %842 = vmatpush.msra.mxu0 %v232
    %843 = vmatpush.msra.mxu0 %v190
    %844 = vmatpush.msra.mxu0 %v148
    %845 = vmatpush.msra.mxu0 %v106
    %846 = vmatpush.msra.mxu0 %v64
    %847 = vmatmul.f32.gmra.mxu0 %v58
    %v848 = vpop.f32.mrf.mxu0
    %v849 = vadd.f32 0.0, %v848
    %850 = vdwg.mxu0
    %851 = vmatpush.msra.mxu0 %v695
    %852 = vmatpush.msra.mxu0 %v653
    %853 = vmatpush.msra.mxu0 %v611
    %854 = vmatpush.msra.mxu0 %v569
    %855 = vmatpush.msra.mxu0 %v527
    %856 = vmatpush.msra.mxu0 %v485
    %857 = vmatpush.msra.mxu0 %v443
    %858 = vmatpush.msra.mxu0 %v401
    %859 = vmatpush.msra.mxu0 %v359
    %860 = vmatpush.msra.mxu0 %v317
    %861 = vmatpush.msra.mxu0 %v275
    %862 = vmatpush.msra.mxu0 %v233
    %863 = vmatpush.msra.mxu0 %v191
    %864 = vmatpush.msra.mxu0 %v149
    %865 = vmatpush.msra.mxu0 %v107
    %866 = vmatpush.msra.mxu0 %v65
    %867 = vmatmul.f32.gmra.mxu0 %v58
    %v868 = vpop.f32.mrf.mxu0
    %v869 = vadd.f32 0.0, %v868
    %870 = vdwg.mxu0
    %871 = vmatpush.msra.mxu0 %v696
    %872 = vmatpush.msra.mxu0 %v654
    %873 = vmatpush.msra.mxu0 %v612
    %874 = vmatpush.msra.mxu0 %v570
    %875 = vmatpush.msra.mxu0 %v528
    %876 = vmatpush.msra.mxu0 %v486
    %877 = vmatpush.msra.mxu0 %v444
    %878 = vmatpush.msra.mxu0 %v402
    %879 = vmatpush.msra.mxu0 %v360
    %880 = vmatpush.msra.mxu0 %v318
    %881 = vmatpush.msra.mxu0 %v276
    %882 = vmatpush.msra.mxu0 %v234
    %883 = vmatpush.msra.mxu0 %v192
    %884 = vmatpush.msra.mxu0 %v150
    %885 = vmatpush.msra.mxu0 %v108
    %886 = vmatpush.msra.mxu0 %v66
    %887 = vmatmul.f32.gmra.mxu0 %v58
    %v888 = vpop.f32.mrf.mxu0
    %v889 = vadd.f32 0.0, %v888
    %890 = vdwg.mxu0
    %891 = vmatpush.msra.mxu0 %v697
    %892 = vmatpush.msra.mxu0 %v655
    %893 = vmatpush.msra.mxu0 %v613
    %894 = vmatpush.msra.mxu0 %v571
    %895 = vmatpush.msra.mxu0 %v529
    %896 = vmatpush.msra.mxu0 %v487
    %897 = vmatpush.msra.mxu0 %v445
    %898 = vmatpush.msra.mxu0 %v403
    %899 = vmatpush.msra.mxu0 %v361
    %900 = vmatpush.msra.mxu0 %v319
    %901 = vmatpush.msra.mxu0 %v277
    %902 = vmatpush.msra.mxu0 %v235
    %903 = vmatpush.msra.mxu0 %v193
    %904 = vmatpush.msra.mxu0 %v151
    %905 = vmatpush.msra.mxu0 %v109
    %906 = vmatpush.msra.mxu0 %v67
    %907 = vmatmul.f32.gmra.mxu0 %v58
    %v908 = vpop.f32.mrf.mxu0
    %v909 = vadd.f32 0.0, %v908
    %910 = vdwg.mxu0
    %911 = vmatpush.msra.mxu0 %v698
    %912 = vmatpush.msra.mxu0 %v656
    %913 = vmatpush.msra.mxu0 %v614
    %914 = vmatpush.msra.mxu0 %v572
    %915 = vmatpush.msra.mxu0 %v530
    %916 = vmatpush.msra.mxu0 %v488
    %917 = vmatpush.msra.mxu0 %v446
    %918 = vmatpush.msra.mxu0 %v404
    %919 = vmatpush.msra.mxu0 %v362
    %920 = vmatpush.msra.mxu0 %v320
    %921 = vmatpush.msra.mxu0 %v278
    %922 = vmatpush.msra.mxu0 %v236
    %923 = vmatpush.msra.mxu0 %v194
    %924 = vmatpush.msra.mxu0 %v152
    %925 = vmatpush.msra.mxu0 %v110
    %926 = vmatpush.msra.mxu0 %v68
    %927 = vmatmul.f32.gmra.mxu0 %v58
    %v928 = vpop.f32.mrf.mxu0
    %v929 = vadd.f32 0.0, %v928
    %930 = vdwg.mxu0
    %931 = vmatpush.msra.mxu0 %v699
    %932 = vmatpush.msra.mxu0 %v657
    %933 = vmatpush.msra.mxu0 %v615
    %934 = vmatpush.msra.mxu0 %v573
    %935 = vmatpush.msra.mxu0 %v531
    %936 = vmatpush.msra.mxu0 %v489
    %937 = vmatpush.msra.mxu0 %v447
    %938 = vmatpush.msra.mxu0 %v405
    %939 = vmatpush.msra.mxu0 %v363
    %940 = vmatpush.msra.mxu0 %v321
    %941 = vmatpush.msra.mxu0 %v279
    %942 = vmatpush.msra.mxu0 %v237
    %943 = vmatpush.msra.mxu0 %v195
    %944 = vmatpush.msra.mxu0 %v153
    %945 = vmatpush.msra.mxu0 %v111
    %946 = vmatpush.msra.mxu0 %v69
    %947 = vmatmul.f32.gmra.mxu0 %v58
    %v948 = vpop.f32.mrf.mxu0
    %v949 = vadd.f32 0.0, %v948
    %950 = vdwg.mxu0
    %951 = vmatpush.msra.mxu0 %v700
    %952 = vmatpush.msra.mxu0 %v658
    %953 = vmatpush.msra.mxu0 %v616
    %954 = vmatpush.msra.mxu0 %v574
    %955 = vmatpush.msra.mxu0 %v532
    %956 = vmatpush.msra.mxu0 %v490
    %957 = vmatpush.msra.mxu0 %v448
    %958 = vmatpush.msra.mxu0 %v406
    %959 = vmatpush.msra.mxu0 %v364
    %960 = vmatpush.msra.mxu0 %v322
    %961 = vmatpush.msra.mxu0 %v280
    %962 = vmatpush.msra.mxu0 %v238
    %963 = vmatpush.msra.mxu0 %v196
    %964 = vmatpush.msra.mxu0 %v154
    %965 = vmatpush.msra.mxu0 %v112
    %966 = vmatpush.msra.mxu0 %v70
    %967 = vmatmul.f32.gmra.mxu0 %v58
    %v968 = vpop.f32.mrf.mxu0
    %v969 = vadd.f32 0.0, %v968
    %970 = vdwg.mxu0
    %971 = vmatpush.msra.mxu0 %v701
    %972 = vmatpush.msra.mxu0 %v659
    %973 = vmatpush.msra.mxu0 %v617
    %974 = vmatpush.msra.mxu0 %v575
    %975 = vmatpush.msra.mxu0 %v533
    %976 = vmatpush.msra.mxu0 %v491
    %977 = vmatpush.msra.mxu0 %v449
    %978 = vmatpush.msra.mxu0 %v407
    %979 = vmatpush.msra.mxu0 %v365
    %980 = vmatpush.msra.mxu0 %v323
    %981 = vmatpush.msra.mxu0 %v281
    %982 = vmatpush.msra.mxu0 %v239
    %983 = vmatpush.msra.mxu0 %v197
    %984 = vmatpush.msra.mxu0 %v155
    %985 = vmatpush.msra.mxu0 %v113
    %986 = vmatpush.msra.mxu0 %v71
    %987 = vmatmul.f32.gmra.mxu0 %v58
    %v988 = vpop.f32.mrf.mxu0
    %v989 = vadd.f32 0.0, %v988
    %990 = vdwg.mxu0
    %991 = vmatpush.msra.mxu0 %v702
    %992 = vmatpush.msra.mxu0 %v660
    %993 = vmatpush.msra.mxu0 %v618
    %994 = vmatpush.msra.mxu0 %v576
    %995 = vmatpush.msra.mxu0 %v534
    %996 = vmatpush.msra.mxu0 %v492
    %997 = vmatpush.msra.mxu0 %v450
    %998 = vmatpush.msra.mxu0 %v408
    %999 = vmatpush.msra.mxu0 %v366
    %1000 = vmatpush.msra.mxu0 %v324
    %1001 = vmatpush.msra.mxu0 %v282
    %1002 = vmatpush.msra.mxu0 %v240
    %1003 = vmatpush.msra.mxu0 %v198
    %1004 = vmatpush.msra.mxu0 %v156
    %1005 = vmatpush.msra.mxu0 %v114
    %1006 = vmatpush.msra.mxu0 %v72
    %1007 = vmatmul.f32.gmra.mxu0 %v58
    %v1008 = vpop.f32.mrf.mxu0
    %v1009 = vadd.f32 0.0, %v1008
    %1010 = vdwg.mxu0
    %1011 = vmatpush.msra.mxu0 %v703
    %1012 = vmatpush.msra.mxu0 %v661
    %1013 = vmatpush.msra.mxu0 %v619
    %1014 = vmatpush.msra.mxu0 %v577
    %1015 = vmatpush.msra.mxu0 %v535
    %1016 = vmatpush.msra.mxu0 %v493
    %1017 = vmatpush.msra.mxu0 %v451
    %1018 = vmatpush.msra.mxu0 %v409
    %1019 = vmatpush.msra.mxu0 %v367
    %1020 = vmatpush.msra.mxu0 %v325
    %1021 = vmatpush.msra.mxu0 %v283
    %1022 = vmatpush.msra.mxu0 %v241
    %1023 = vmatpush.msra.mxu0 %v199
    %1024 = vmatpush.msra.mxu0 %v157
    %1025 = vmatpush.msra.mxu0 %v115
    %1026 = vmatpush.msra.mxu0 %v73
    %1027 = vmatmul.f32.gmra.mxu0 %v58
    %v1028 = vpop.f32.mrf.mxu0
    %v1029 = vadd.f32 0.0, %v1028
    %1030 = vdwg.mxu0
    %1031 = vmatpush.msra.mxu0 %v704
    %1032 = vmatpush.msra.mxu0 %v662
    %1033 = vmatpush.msra.mxu0 %v620
    %1034 = vmatpush.msra.mxu0 %v578
    %1035 = vmatpush.msra.mxu0 %v536
    %1036 = vmatpush.msra.mxu0 %v494
    %1037 = vmatpush.msra.mxu0 %v452
    %1038 = vmatpush.msra.mxu0 %v410
    %1039 = vmatpush.msra.mxu0 %v368
    %1040 = vmatpush.msra.mxu0 %v326
    %1041 = vmatpush.msra.mxu0 %v284
    %1042 = vmatpush.msra.mxu0 %v242
    %1043 = vmatpush.msra.mxu0 %v200
    %1044 = vmatpush.msra.mxu0 %v158
    %1045 = vmatpush.msra.mxu0 %v116
    %1046 = vmatpush.msra.mxu0 %v74
    %1047 = vmatmul.f32.gmra.mxu0 %v58
    %v1048 = vpop.f32.mrf.mxu0
    %v1049 = vadd.f32 0.0, %v1048
    %1050 = vdwg.mxu0
    %1051 = vmatpush.msra.mxu0 %v705
    %1052 = vmatpush.msra.mxu0 %v663
    %1053 = vmatpush.msra.mxu0 %v621
    %1054 = vmatpush.msra.mxu0 %v579
    %1055 = vmatpush.msra.mxu0 %v537
    %1056 = vmatpush.msra.mxu0 %v495
    %1057 = vmatpush.msra.mxu0 %v453
    %1058 = vmatpush.msra.mxu0 %v411
    %1059 = vmatpush.msra.mxu0 %v369
    %1060 = vmatpush.msra.mxu0 %v327
    %1061 = vmatpush.msra.mxu0 %v285
    %1062 = vmatpush.msra.mxu0 %v243
    %1063 = vmatpush.msra.mxu0 %v201
    %1064 = vmatpush.msra.mxu0 %v159
    %1065 = vmatpush.msra.mxu0 %v117
    %1066 = vmatpush.msra.mxu0 %v75
    %1067 = vmatmul.f32.gmra.mxu0 %v58
    %v1068 = vpop.f32.mrf.mxu0
    %v1069 = vadd.f32 0.0, %v1068
    %1070 = vdwg.mxu0
    %1071 = vmatpush.msra.mxu0 %v706
    %1072 = vmatpush.msra.mxu0 %v664
    %1073 = vmatpush.msra.mxu0 %v622
    %1074 = vmatpush.msra.mxu0 %v580
    %1075 = vmatpush.msra.mxu0 %v538
    %1076 = vmatpush.msra.mxu0 %v496
    %1077 = vmatpush.msra.mxu0 %v454
    %1078 = vmatpush.msra.mxu0 %v412
    %1079 = vmatpush.msra.mxu0 %v370
    %1080 = vmatpush.msra.mxu0 %v328
    %1081 = vmatpush.msra.mxu0 %v286
    %1082 = vmatpush.msra.mxu0 %v244
    %1083 = vmatpush.msra.mxu0 %v202
    %1084 = vmatpush.msra.mxu0 %v160
    %1085 = vmatpush.msra.mxu0 %v118
    %1086 = vmatpush.msra.mxu0 %v76
    %1087 = vmatmul.f32.gmra.mxu0 %v58
    %v1088 = vpop.f32.mrf.mxu0
    %v1089 = vadd.f32 0.0, %v1088
    %1090 = vdwg.mxu0
    %1091 = vmatpush.msra.mxu0 %v707
    %1092 = vmatpush.msra.mxu0 %v665
    %1093 = vmatpush.msra.mxu0 %v623
    %1094 = vmatpush.msra.mxu0 %v581
    %1095 = vmatpush.msra.mxu0 %v539
    %1096 = vmatpush.msra.mxu0 %v497
    %1097 = vmatpush.msra.mxu0 %v455
    %1098 = vmatpush.msra.mxu0 %v413
    %1099 = vmatpush.msra.mxu0 %v371
    %1100 = vmatpush.msra.mxu0 %v329
    %1101 = vmatpush.msra.mxu0 %v287
    %1102 = vmatpush.msra.mxu0 %v245
    %1103 = vmatpush.msra.mxu0 %v203
    %1104 = vmatpush.msra.mxu0 %v161
    %1105 = vmatpush.msra.mxu0 %v119
    %1106 = vmatpush.msra.mxu0 %v77
    %1107 = vmatmul.f32.gmra.mxu0 %v58
    %v1108 = vpop.f32.mrf.mxu0
    %v1109 = vadd.f32 0.0, %v1108
    %1110 = vdwg.mxu0
    %1111 = vmatpush.msra.mxu0 %v708
    %1112 = vmatpush.msra.mxu0 %v666
    %1113 = vmatpush.msra.mxu0 %v624
    %1114 = vmatpush.msra.mxu0 %v582
    %1115 = vmatpush.msra.mxu0 %v540
    %1116 = vmatpush.msra.mxu0 %v498
    %1117 = vmatpush.msra.mxu0 %v456
    %1118 = vmatpush.msra.mxu0 %v414
    %1119 = vmatpush.msra.mxu0 %v372
    %1120 = vmatpush.msra.mxu0 %v330
    %1121 = vmatpush.msra.mxu0 %v288
    %1122 = vmatpush.msra.mxu0 %v246
    %1123 = vmatpush.msra.mxu0 %v204
    %1124 = vmatpush.msra.mxu0 %v162
    %1125 = vmatpush.msra.mxu0 %v120
    %1126 = vmatpush.msra.mxu0 %v78
    %1127 = vmatmul.f32.gmra.mxu0 %v58
    %v1128 = vpop.f32.mrf.mxu0
    %v1129 = vadd.f32 0.0, %v1128
    %1130 = vdwg.mxu0
    %1131 = vmatpush.msra.mxu0 %v709
    %1132 = vmatpush.msra.mxu0 %v667
    %1133 = vmatpush.msra.mxu0 %v625
    %1134 = vmatpush.msra.mxu0 %v583
    %1135 = vmatpush.msra.mxu0 %v541
    %1136 = vmatpush.msra.mxu0 %v499
    %1137 = vmatpush.msra.mxu0 %v457
    %1138 = vmatpush.msra.mxu0 %v415
    %1139 = vmatpush.msra.mxu0 %v373
    %1140 = vmatpush.msra.mxu0 %v331
    %1141 = vmatpush.msra.mxu0 %v289
    %1142 = vmatpush.msra.mxu0 %v247
    %1143 = vmatpush.msra.mxu0 %v205
    %1144 = vmatpush.msra.mxu0 %v163
    %1145 = vmatpush.msra.mxu0 %v121
    %1146 = vmatpush.msra.mxu0 %v79
    %1147 = vmatmul.f32.gmra.mxu0 %v58
    %v1148 = vpop.f32.mrf.mxu0
    %v1149 = vadd.f32 0.0, %v1148
    %1150 = vdwg.mxu0
    %1151 = vmatpush.msra.mxu0 %v710
    %1152 = vmatpush.msra.mxu0 %v668
    %1153 = vmatpush.msra.mxu0 %v626
    %1154 = vmatpush.msra.mxu0 %v584
    %1155 = vmatpush.msra.mxu0 %v542
    %1156 = vmatpush.msra.mxu0 %v500
    %1157 = vmatpush.msra.mxu0 %v458
    %1158 = vmatpush.msra.mxu0 %v416
    %1159 = vmatpush.msra.mxu0 %v374
    %1160 = vmatpush.msra.mxu0 %v332
    %1161 = vmatpush.msra.mxu0 %v290
    %1162 = vmatpush.msra.mxu0 %v248
    %1163 = vmatpush.msra.mxu0 %v206
    %1164 = vmatpush.msra.mxu0 %v164
    %1165 = vmatpush.msra.mxu0 %v122
    %1166 = vmatpush.msra.mxu0 %v80
    %1167 = vmatmul.f32.gmra.mxu0 %v58
    %v1168 = vpop.f32.mrf.mxu0
    %v1169 = vadd.f32 0.0, %v1168
    %1170 = vdwg.mxu0
    %1171 = vmatpush.msra.mxu0 %v711
    %1172 = vmatpush.msra.mxu0 %v669
    %1173 = vmatpush.msra.mxu0 %v627
    %1174 = vmatpush.msra.mxu0 %v585
    %1175 = vmatpush.msra.mxu0 %v543
    %1176 = vmatpush.msra.mxu0 %v501
    %1177 = vmatpush.msra.mxu0 %v459
    %1178 = vmatpush.msra.mxu0 %v417
    %1179 = vmatpush.msra.mxu0 %v375
    %1180 = vmatpush.msra.mxu0 %v333
    %1181 = vmatpush.msra.mxu0 %v291
    %1182 = vmatpush.msra.mxu0 %v249
    %1183 = vmatpush.msra.mxu0 %v207
    %1184 = vmatpush.msra.mxu0 %v165
    %1185 = vmatpush.msra.mxu0 %v123
    %1186 = vmatpush.msra.mxu0 %v81
    %1187 = vmatmul.f32.gmra.mxu0 %v58
    %v1188 = vpop.f32.mrf.mxu0
    %v1189 = vadd.f32 0.0, %v1188
    %1190 = vdwg.mxu0
    %1191 = vmatpush.msra.mxu0 %v712
    %1192 = vmatpush.msra.mxu0 %v670
    %1193 = vmatpush.msra.mxu0 %v628
    %1194 = vmatpush.msra.mxu0 %v586
    %1195 = vmatpush.msra.mxu0 %v544
    %1196 = vmatpush.msra.mxu0 %v502
    %1197 = vmatpush.msra.mxu0 %v460
    %1198 = vmatpush.msra.mxu0 %v418
    %1199 = vmatpush.msra.mxu0 %v376
    %1200 = vmatpush.msra.mxu0 %v334
    %1201 = vmatpush.msra.mxu0 %v292
    %1202 = vmatpush.msra.mxu0 %v250
    %1203 = vmatpush.msra.mxu0 %v208
    %1204 = vmatpush.msra.mxu0 %v166
    %1205 = vmatpush.msra.mxu0 %v124
    %1206 = vmatpush.msra.mxu0 %v82
    %1207 = vmatmul.f32.gmra.mxu0 %v58
    %v1208 = vpop.f32.mrf.mxu0
    %v1209 = vadd.f32 0.0, %v1208
    %1210 = vdwg.mxu0
    %1211 = vmatpush.msra.mxu0 %v713
    %1212 = vmatpush.msra.mxu0 %v671
    %1213 = vmatpush.msra.mxu0 %v629
    %1214 = vmatpush.msra.mxu0 %v587
    %1215 = vmatpush.msra.mxu0 %v545
    %1216 = vmatpush.msra.mxu0 %v503
    %1217 = vmatpush.msra.mxu0 %v461
    %1218 = vmatpush.msra.mxu0 %v419
    %1219 = vmatpush.msra.mxu0 %v377
    %1220 = vmatpush.msra.mxu0 %v335
    %1221 = vmatpush.msra.mxu0 %v293
    %1222 = vmatpush.msra.mxu0 %v251
    %1223 = vmatpush.msra.mxu0 %v209
    %1224 = vmatpush.msra.mxu0 %v167
    %1225 = vmatpush.msra.mxu0 %v125
    %1226 = vmatpush.msra.mxu0 %v83
    %1227 = vmatmul.f32.gmra.mxu0 %v58
    %v1228 = vpop.f32.mrf.mxu0
    %v1229 = vadd.f32 0.0, %v1228
    %1230 = vdwg.mxu0
    %1231 = vmatpush.msra.mxu0 %v714
    %1232 = vmatpush.msra.mxu0 %v672
    %1233 = vmatpush.msra.mxu0 %v630
    %1234 = vmatpush.msra.mxu0 %v588
    %1235 = vmatpush.msra.mxu0 %v546
    %1236 = vmatpush.msra.mxu0 %v504
    %1237 = vmatpush.msra.mxu0 %v462
    %1238 = vmatpush.msra.mxu0 %v420
    %1239 = vmatpush.msra.mxu0 %v378
    %1240 = vmatpush.msra.mxu0 %v336
    %1241 = vmatpush.msra.mxu0 %v294
    %1242 = vmatpush.msra.mxu0 %v252
    %1243 = vmatpush.msra.mxu0 %v210
    %1244 = vmatpush.msra.mxu0 %v168
    %1245 = vmatpush.msra.mxu0 %v126
    %1246 = vmatpush.msra.mxu0 %v84
    %1247 = vmatmul.f32.gmra.mxu0 %v58
    %v1248 = vpop.f32.mrf.mxu0
    %v1249 = vadd.f32 0.0, %v1248
    %1250 = vdwg.mxu0
    %1251 = vmatpush.msra.mxu0 %v715
    %1252 = vmatpush.msra.mxu0 %v673
    %1253 = vmatpush.msra.mxu0 %v631
    %1254 = vmatpush.msra.mxu0 %v589
    %1255 = vmatpush.msra.mxu0 %v547
    %1256 = vmatpush.msra.mxu0 %v505
    %1257 = vmatpush.msra.mxu0 %v463
    %1258 = vmatpush.msra.mxu0 %v421
    %1259 = vmatpush.msra.mxu0 %v379
    %1260 = vmatpush.msra.mxu0 %v337
    %1261 = vmatpush.msra.mxu0 %v295
    %1262 = vmatpush.msra.mxu0 %v253
    %1263 = vmatpush.msra.mxu0 %v211
    %1264 = vmatpush.msra.mxu0 %v169
    %1265 = vmatpush.msra.mxu0 %v127
    %1266 = vmatpush.msra.mxu0 %v85
    %1267 = vmatmul.f32.gmra.mxu0 %v58
    %v1268 = vpop.f32.mrf.mxu0
    %v1269 = vadd.f32 0.0, %v1268
    %1270 = vdwg.mxu0
    %1271 = vmatpush.msra.mxu0 %v716
    %1272 = vmatpush.msra.mxu0 %v674
    %1273 = vmatpush.msra.mxu0 %v632
    %1274 = vmatpush.msra.mxu0 %v590
    %1275 = vmatpush.msra.mxu0 %v548
    %1276 = vmatpush.msra.mxu0 %v506
    %1277 = vmatpush.msra.mxu0 %v464
    %1278 = vmatpush.msra.mxu0 %v422
    %1279 = vmatpush.msra.mxu0 %v380
    %1280 = vmatpush.msra.mxu0 %v338
    %1281 = vmatpush.msra.mxu0 %v296
    %1282 = vmatpush.msra.mxu0 %v254
    %1283 = vmatpush.msra.mxu0 %v212
    %1284 = vmatpush.msra.mxu0 %v170
    %1285 = vmatpush.msra.mxu0 %v128
    %1286 = vmatpush.msra.mxu0 %v86
    %1287 = vmatmul.f32.gmra.mxu0 %v58
    %v1288 = vpop.f32.mrf.mxu0
    %v1289 = vadd.f32 0.0, %v1288
    %1290 = vdwg.mxu0
    %1291 = vmatpush.msra.mxu0 %v717
    %1292 = vmatpush.msra.mxu0 %v675
    %1293 = vmatpush.msra.mxu0 %v633
    %1294 = vmatpush.msra.mxu0 %v591
    %1295 = vmatpush.msra.mxu0 %v549
    %1296 = vmatpush.msra.mxu0 %v507
    %1297 = vmatpush.msra.mxu0 %v465
    %1298 = vmatpush.msra.mxu0 %v423
    %1299 = vmatpush.msra.mxu0 %v381
    %1300 = vmatpush.msra.mxu0 %v339
    %1301 = vmatpush.msra.mxu0 %v297
    %1302 = vmatpush.msra.mxu0 %v255
    %1303 = vmatpush.msra.mxu0 %v213
    %1304 = vmatpush.msra.mxu0 %v171
    %1305 = vmatpush.msra.mxu0 %v129
    %1306 = vmatpush.msra.mxu0 %v87
    %1307 = vmatmul.f32.gmra.mxu0 %v58
    %v1308 = vpop.f32.mrf.mxu0
    %v1309 = vadd.f32 0.0, %v1308
    %1310 = vdwg.mxu0
    %1311 = vmatpush.msra.mxu0 %v718
    %1312 = vmatpush.msra.mxu0 %v676
    %1313 = vmatpush.msra.mxu0 %v634
    %1314 = vmatpush.msra.mxu0 %v592
    %1315 = vmatpush.msra.mxu0 %v550
    %1316 = vmatpush.msra.mxu0 %v508
    %1317 = vmatpush.msra.mxu0 %v466
    %1318 = vmatpush.msra.mxu0 %v424
    %1319 = vmatpush.msra.mxu0 %v382
    %1320 = vmatpush.msra.mxu0 %v340
    %1321 = vmatpush.msra.mxu0 %v298
    %1322 = vmatpush.msra.mxu0 %v256
    %1323 = vmatpush.msra.mxu0 %v214
    %1324 = vmatpush.msra.mxu0 %v172
    %1325 = vmatpush.msra.mxu0 %v130
    %1326 = vmatpush.msra.mxu0 %v88
    %1327 = vmatmul.f32.gmra.mxu0 %v58
    %v1328 = vpop.f32.mrf.mxu0
    %v1329 = vadd.f32 0.0, %v1328
    %1330 = vdwg.mxu0
    %1331 = vmatpush.msra.mxu0 %v719
    %1332 = vmatpush.msra.mxu0 %v677
    %1333 = vmatpush.msra.mxu0 %v635
    %1334 = vmatpush.msra.mxu0 %v593
    %1335 = vmatpush.msra.mxu0 %v551
    %1336 = vmatpush.msra.mxu0 %v509
    %1337 = vmatpush.msra.mxu0 %v467
    %1338 = vmatpush.msra.mxu0 %v425
    %1339 = vmatpush.msra.mxu0 %v383
    %1340 = vmatpush.msra.mxu0 %v341
    %1341 = vmatpush.msra.mxu0 %v299
    %1342 = vmatpush.msra.mxu0 %v257
    %1343 = vmatpush.msra.mxu0 %v215
    %1344 = vmatpush.msra.mxu0 %v173
    %1345 = vmatpush.msra.mxu0 %v131
    %1346 = vmatpush.msra.mxu0 %v89
    %1347 = vmatmul.f32.gmra.mxu0 %v58
    %v1348 = vpop.f32.mrf.mxu0
    %v1349 = vadd.f32 0.0, %v1348
    %1350 = vdwg.mxu0
    %1351 = vmatpush.msra.mxu0 %v720
    %1352 = vmatpush.msra.mxu0 %v678
    %1353 = vmatpush.msra.mxu0 %v636
    %1354 = vmatpush.msra.mxu0 %v594
    %1355 = vmatpush.msra.mxu0 %v552
    %1356 = vmatpush.msra.mxu0 %v510
    %1357 = vmatpush.msra.mxu0 %v468
    %1358 = vmatpush.msra.mxu0 %v426
    %1359 = vmatpush.msra.mxu0 %v384
    %1360 = vmatpush.msra.mxu0 %v342
    %1361 = vmatpush.msra.mxu0 %v300
    %1362 = vmatpush.msra.mxu0 %v258
    %1363 = vmatpush.msra.mxu0 %v216
    %1364 = vmatpush.msra.mxu0 %v174
    %1365 = vmatpush.msra.mxu0 %v132
    %1366 = vmatpush.msra.mxu0 %v90
    %1367 = vmatmul.f32.gmra.mxu0 %v58
    %v1368 = vpop.f32.mrf.mxu0
    %v1369 = vadd.f32 0.0, %v1368
    %1370 = vdwg.mxu0
    %1371 = vmatpush.msra.mxu0 %v721
    %1372 = vmatpush.msra.mxu0 %v679
    %1373 = vmatpush.msra.mxu0 %v637
    %1374 = vmatpush.msra.mxu0 %v595
    %1375 = vmatpush.msra.mxu0 %v553
    %1376 = vmatpush.msra.mxu0 %v511
    %1377 = vmatpush.msra.mxu0 %v469
    %1378 = vmatpush.msra.mxu0 %v427
    %1379 = vmatpush.msra.mxu0 %v385
    %1380 = vmatpush.msra.mxu0 %v343
    %1381 = vmatpush.msra.mxu0 %v301
    %1382 = vmatpush.msra.mxu0 %v259
    %1383 = vmatpush.msra.mxu0 %v217
    %1384 = vmatpush.msra.mxu0 %v175
    %1385 = vmatpush.msra.mxu0 %v133
    %1386 = vmatpush.msra.mxu0 %v91
    %1387 = vmatmul.f32.gmra.mxu0 %v58
    %v1388 = vpop.f32.mrf.mxu0
    %v1389 = vadd.f32 0.0, %v1388
    %1390 = vdwg.mxu0
    %1391 = vmatpush.msra.mxu0 %v722
    %1392 = vmatpush.msra.mxu0 %v680
    %1393 = vmatpush.msra.mxu0 %v638
    %1394 = vmatpush.msra.mxu0 %v596
    %1395 = vmatpush.msra.mxu0 %v554
    %1396 = vmatpush.msra.mxu0 %v512
    %1397 = vmatpush.msra.mxu0 %v470
    %1398 = vmatpush.msra.mxu0 %v428
    %1399 = vmatpush.msra.mxu0 %v386
    %1400 = vmatpush.msra.mxu0 %v344
    %1401 = vmatpush.msra.mxu0 %v302
    %1402 = vmatpush.msra.mxu0 %v260
    %1403 = vmatpush.msra.mxu0 %v218
    %1404 = vmatpush.msra.mxu0 %v176
    %1405 = vmatpush.msra.mxu0 %v134
    %1406 = vmatpush.msra.mxu0 %v92
    %1407 = vmatmul.f32.gmra.mxu0 %v58
    %v1408 = vpop.f32.mrf.mxu0
    %v1409 = vadd.f32 0.0, %v1408
    %1410 = vdwg.mxu0
    %1411 = vmatpush.msra.mxu0 %v723
    %1412 = vmatpush.msra.mxu0 %v681
    %1413 = vmatpush.msra.mxu0 %v639
    %1414 = vmatpush.msra.mxu0 %v597
    %1415 = vmatpush.msra.mxu0 %v555
    %1416 = vmatpush.msra.mxu0 %v513
    %1417 = vmatpush.msra.mxu0 %v471
    %1418 = vmatpush.msra.mxu0 %v429
    %1419 = vmatpush.msra.mxu0 %v387
    %1420 = vmatpush.msra.mxu0 %v345
    %1421 = vmatpush.msra.mxu0 %v303
    %1422 = vmatpush.msra.mxu0 %v261
    %1423 = vmatpush.msra.mxu0 %v219
    %1424 = vmatpush.msra.mxu0 %v177
    %1425 = vmatpush.msra.mxu0 %v135
    %1426 = vmatpush.msra.mxu0 %v93
    %1427 = vmatmul.f32.gmra.mxu0 %v58
    %v1428 = vpop.f32.mrf.mxu0
    %v1429 = vadd.f32 0.0, %v1428
    %1430 = vdwg.mxu0
    %1431 = vmatpush.msra.mxu0 %v724
    %1432 = vmatpush.msra.mxu0 %v682
    %1433 = vmatpush.msra.mxu0 %v640
    %1434 = vmatpush.msra.mxu0 %v598
    %1435 = vmatpush.msra.mxu0 %v556
    %1436 = vmatpush.msra.mxu0 %v514
    %1437 = vmatpush.msra.mxu0 %v472
    %1438 = vmatpush.msra.mxu0 %v430
    %1439 = vmatpush.msra.mxu0 %v388
    %1440 = vmatpush.msra.mxu0 %v346
    %1441 = vmatpush.msra.mxu0 %v304
    %1442 = vmatpush.msra.mxu0 %v262
    %1443 = vmatpush.msra.mxu0 %v220
    %1444 = vmatpush.msra.mxu0 %v178
    %1445 = vmatpush.msra.mxu0 %v136
    %1446 = vmatpush.msra.mxu0 %v94
    %1447 = vmatmul.f32.gmra.mxu0 %v58
    %v1448 = vpop.f32.mrf.mxu0
    %v1449 = vadd.f32 0.0, %v1448
    %1450 = vdwg.mxu0
    %1451 = vmatpush.msra.mxu0 %v725
    %1452 = vmatpush.msra.mxu0 %v683
    %1453 = vmatpush.msra.mxu0 %v641
    %1454 = vmatpush.msra.mxu0 %v599
    %1455 = vmatpush.msra.mxu0 %v557
    %1456 = vmatpush.msra.mxu0 %v515
    %1457 = vmatpush.msra.mxu0 %v473
    %1458 = vmatpush.msra.mxu0 %v431
    %1459 = vmatpush.msra.mxu0 %v389
    %1460 = vmatpush.msra.mxu0 %v347
    %1461 = vmatpush.msra.mxu0 %v305
    %1462 = vmatpush.msra.mxu0 %v263
    %1463 = vmatpush.msra.mxu0 %v221
    %1464 = vmatpush.msra.mxu0 %v179
    %1465 = vmatpush.msra.mxu0 %v137
    %1466 = vmatpush.msra.mxu0 %v95
    %1467 = vmatmul.f32.gmra.mxu0 %v58
    %v1468 = vpop.f32.mrf.mxu0
    %v1469 = vadd.f32 0.0, %v1468
    %1470 = vdwg.mxu0
    %1471 = vmatpush.msra.mxu0 %v726
    %1472 = vmatpush.msra.mxu0 %v684
    %1473 = vmatpush.msra.mxu0 %v642
    %1474 = vmatpush.msra.mxu0 %v600
    %1475 = vmatpush.msra.mxu0 %v558
    %1476 = vmatpush.msra.mxu0 %v516
    %1477 = vmatpush.msra.mxu0 %v474
    %1478 = vmatpush.msra.mxu0 %v432
    %1479 = vmatpush.msra.mxu0 %v390
    %1480 = vmatpush.msra.mxu0 %v348
    %1481 = vmatpush.msra.mxu0 %v306
    %1482 = vmatpush.msra.mxu0 %v264
    %1483 = vmatpush.msra.mxu0 %v222
    %1484 = vmatpush.msra.mxu0 %v180
    %1485 = vmatpush.msra.mxu0 %v138
    %1486 = vmatpush.msra.mxu0 %v96
    %1487 = vmatmul.f32.gmra.mxu0 %v58
    %v1488 = vpop.f32.mrf.mxu0
    %v1489 = vadd.f32 0.0, %v1488
    %1490 = vdwg.mxu0
    %1491 = vmatpush.msra.mxu0 %v727
    %1492 = vmatpush.msra.mxu0 %v685
    %1493 = vmatpush.msra.mxu0 %v643
    %1494 = vmatpush.msra.mxu0 %v601
    %1495 = vmatpush.msra.mxu0 %v559
    %1496 = vmatpush.msra.mxu0 %v517
    %1497 = vmatpush.msra.mxu0 %v475
    %1498 = vmatpush.msra.mxu0 %v433
    %1499 = vmatpush.msra.mxu0 %v391
    %1500 = vmatpush.msra.mxu0 %v349
    %1501 = vmatpush.msra.mxu0 %v307
    %1502 = vmatpush.msra.mxu0 %v265
    %1503 = vmatpush.msra.mxu0 %v223
    %1504 = vmatpush.msra.mxu0 %v181
    %1505 = vmatpush.msra.mxu0 %v139
    %1506 = vmatpush.msra.mxu0 %v97
    %1507 = vmatmul.f32.gmra.mxu0 %v58
    %v1508 = vpop.f32.mrf.mxu0
    %v1509 = vadd.f32 0.0, %v1508
    %1510 = vdwg.mxu0
    %1511 = vmatpush.msra.mxu0 %v728
    %1512 = vmatpush.msra.mxu0 %v686
    %1513 = vmatpush.msra.mxu0 %v644
    %1514 = vmatpush.msra.mxu0 %v602
    %1515 = vmatpush.msra.mxu0 %v560
    %1516 = vmatpush.msra.mxu0 %v518
    %1517 = vmatpush.msra.mxu0 %v476
    %1518 = vmatpush.msra.mxu0 %v434
    %1519 = vmatpush.msra.mxu0 %v392
    %1520 = vmatpush.msra.mxu0 %v350
    %1521 = vmatpush.msra.mxu0 %v308
    %1522 = vmatpush.msra.mxu0 %v266
    %1523 = vmatpush.msra.mxu0 %v224
    %1524 = vmatpush.msra.mxu0 %v182
    %1525 = vmatpush.msra.mxu0 %v140
    %1526 = vmatpush.msra.mxu0 %v98
    %1527 = vmatmul.f32.gmra.mxu0 %v58
    %v1528 = vpop.f32.mrf.mxu0
    %v1529 = vadd.f32 0.0, %v1528
    %1530 = vdwg.mxu0
    %1531 = vmatpush.msra.mxu0 %v729
    %1532 = vmatpush.msra.mxu0 %v687
    %1533 = vmatpush.msra.mxu0 %v645
    %1534 = vmatpush.msra.mxu0 %v603
    %1535 = vmatpush.msra.mxu0 %v561
    %1536 = vmatpush.msra.mxu0 %v519
    %1537 = vmatpush.msra.mxu0 %v477
    %1538 = vmatpush.msra.mxu0 %v435
    %1539 = vmatpush.msra.mxu0 %v393
    %1540 = vmatpush.msra.mxu0 %v351
    %1541 = vmatpush.msra.mxu0 %v309
    %1542 = vmatpush.msra.mxu0 %v267
    %1543 = vmatpush.msra.mxu0 %v225
    %1544 = vmatpush.msra.mxu0 %v183
    %1545 = vmatpush.msra.mxu0 %v141
    %1546 = vmatpush.msra.mxu0 %v99
    %1547 = vmatmul.f32.gmra.mxu0 %v58
    %v1548 = vpop.f32.mrf.mxu0
    %v1549 = vadd.f32 0.0, %v1548
    %1550 = vdwg.mxu0
    %1551 = vmatpush.msra.mxu0 %v730
    %1552 = vmatpush.msra.mxu0 %v688
    %1553 = vmatpush.msra.mxu0 %v646
    %1554 = vmatpush.msra.mxu0 %v604
    %1555 = vmatpush.msra.mxu0 %v562
    %1556 = vmatpush.msra.mxu0 %v520
    %1557 = vmatpush.msra.mxu0 %v478
    %1558 = vmatpush.msra.mxu0 %v436
    %1559 = vmatpush.msra.mxu0 %v394
    %1560 = vmatpush.msra.mxu0 %v352
    %1561 = vmatpush.msra.mxu0 %v310
    %1562 = vmatpush.msra.mxu0 %v268
    %1563 = vmatpush.msra.mxu0 %v226
    %1564 = vmatpush.msra.mxu0 %v184
    %1565 = vmatpush.msra.mxu0 %v142
    %1566 = vmatpush.msra.mxu0 %v100
    %1567 = vmatmul.f32.gmra.mxu0 %v58
    %v1568 = vpop.f32.mrf.mxu0
    %v1569 = vadd.f32 0.0, %v1568
    %1570 = vdwg.mxu0
    %v1571 = vld [vmem:[#allocation7] ss:$2 sm:$0xff]
    %s1572 = scalar_lea.vmem [#allocation7], 16
    %v1573 = vld [vmem:[%s1572] ss:$2 sm:$0xff]
    %s1574 = scalar_lea.vmem [#allocation7], 32
    %v1575 = vld [vmem:[%s1574] ss:$2 sm:$0xff]
    %s1576 = scalar_lea.vmem [#allocation7], 48
    %v1577 = vld [vmem:[%s1576] ss:$2 sm:$0xff]
    %s1578 = scalar_lea.vmem [#allocation7], 64
    %v1579 = vld [vmem:[%s1578] ss:$2 sm:$0xff]
    %s1580 = scalar_lea.vmem [#allocation7], 80
    %v1581 = vld [vmem:[%s1580] ss:$2 sm:$0x3]
    %v1588 = vperm.slane %v1571, 0
    %v1589 = vperm.slane %v1571, 1
    %v1590 = vperm.slane %v1571, 2
    %v1591 = vperm.slane %v1571, 3
    %v1592 = vperm.slane %v1571, 4
    %v1593 = vperm.slane %v1571, 5
    %v1594 = vperm.slane %v1571, 6
    %v1595 = vperm.slane %v1571, 7
    %v1596 = vperm.slane %v1573, 0
    %v1597 = vperm.slane %v1573, 1
    %v1598 = vperm.slane %v1573, 2
    %v1599 = vperm.slane %v1573, 3
    %v1600 = vperm.slane %v1573, 4
    %v1601 = vperm.slane %v1573, 5
    %v1602 = vperm.slane %v1573, 6
    %v1603 = vperm.slane %v1573, 7
    %v1604 = vperm.slane %v1575, 0
    %v1605 = vperm.slane %v1575, 1
    %v1606 = vperm.slane %v1575, 2
    %v1607 = vperm.slane %v1575, 3
    %v1608 = vperm.slane %v1575, 4
    %v1609 = vperm.slane %v1575, 5
    %v1610 = vperm.slane %v1575, 6
    %v1611 = vperm.slane %v1575, 7
    %v1612 = vperm.slane %v1577, 0
    %v1613 = vperm.slane %v1577, 1
    %v1614 = vperm.slane %v1577, 2
    %v1615 = vperm.slane %v1577, 3
    %v1616 = vperm.slane %v1577, 4
    %v1617 = vperm.slane %v1577, 5
    %v1618 = vperm.slane %v1577, 6
    %v1619 = vperm.slane %v1577, 7
    %v1620 = vperm.slane %v1579, 0
    %v1621 = vperm.slane %v1579, 1
    %v1622 = vperm.slane %v1579, 2
    %v1623 = vperm.slane %v1579, 3
    %v1624 = vperm.slane %v1579, 4
    %v1625 = vperm.slane %v1579, 5
    %v1626 = vperm.slane %v1579, 6
    %v1627 = vperm.slane %v1579, 7
    %v1628 = vperm.slane %v1581, 0
    %v1629 = vperm.slane %v1581, 1
    %v1672 = vmul.f32 %v749, %v1588
    %v1673 = vmul.f32 %v769, %v1589
    %v1674 = vmul.f32 %v789, %v1590
    %v1675 = vmul.f32 %v809, %v1591
    %v1676 = vmul.f32 %v829, %v1592
    %v1677 = vmul.f32 %v849, %v1593
    %v1678 = vmul.f32 %v869, %v1594
    %v1679 = vmul.f32 %v889, %v1595
    %v1680 = vmul.f32 %v909, %v1596
    %v1681 = vmul.f32 %v929, %v1597
    %v1682 = vmul.f32 %v949, %v1598
    %v1683 = vmul.f32 %v969, %v1599
    %v1684 = vmul.f32 %v989, %v1600
    %v1685 = vmul.f32 %v1009, %v1601
    %v1686 = vmul.f32 %v1029, %v1602
    %v1687 = vmul.f32 %v1049, %v1603
    %v1688 = vmul.f32 %v1069, %v1604
    %v1689 = vmul.f32 %v1089, %v1605
    %v1690 = vmul.f32 %v1109, %v1606
    %v1691 = vmul.f32 %v1129, %v1607
    %v1692 = vmul.f32 %v1149, %v1608
    %v1693 = vmul.f32 %v1169, %v1609
    %v1694 = vmul.f32 %v1189, %v1610
    %v1695 = vmul.f32 %v1209, %v1611
    %v1696 = vmul.f32 %v1229, %v1612
    %v1697 = vmul.f32 %v1249, %v1613
    %v1698 = vmul.f32 %v1269, %v1614
    %v1699 = vmul.f32 %v1289, %v1615
    %v1700 = vmul.f32 %v1309, %v1616
    %v1701 = vmul.f32 %v1329, %v1617
    %v1702 = vmul.f32 %v1349, %v1618
    %v1703 = vmul.f32 %v1369, %v1619
    %v1704 = vmul.f32 %v1389, %v1620
    %v1705 = vmul.f32 %v1409, %v1621
    %v1706 = vmul.f32 %v1429, %v1622
    %v1707 = vmul.f32 %v1449, %v1623
    %v1708 = vmul.f32 %v1469, %v1624
    %v1709 = vmul.f32 %v1489, %v1625
    %v1710 = vmul.f32 %v1509, %v1626
    %v1711 = vmul.f32 %v1529, %v1627
    %v1712 = vmul.f32 %v1549, %v1628
    %v1713 = vmul.f32 %v1569, %v1629
    %s1714 = scalar_lea.vmem [#allocation7], 1
    %v1715 = vld [vmem:[%s1714] ss:$2 sm:$0xff]
    %s1716 = scalar_lea.vmem [#allocation7], 17
    %v1717 = vld [vmem:[%s1716] ss:$2 sm:$0xff]
    %s1718 = scalar_lea.vmem [#allocation7], 33
    %v1719 = vld [vmem:[%s1718] ss:$2 sm:$0xff]
    %s1720 = scalar_lea.vmem [#allocation7], 49
    %v1721 = vld [vmem:[%s1720] ss:$2 sm:$0xff]
    %s1722 = scalar_lea.vmem [#allocation7], 65
    %v1723 = vld [vmem:[%s1722] ss:$2 sm:$0xff]
    %s1724 = scalar_lea.vmem [#allocation7], 81
    %v1725 = vld [vmem:[%s1724] ss:$2 sm:$0x3]
    %v1732 = vperm.slane %v1715, 0
    %v1733 = vperm.slane %v1715, 1
    %v1734 = vperm.slane %v1715, 2
    %v1735 = vperm.slane %v1715, 3
    %v1736 = vperm.slane %v1715, 4
    %v1737 = vperm.slane %v1715, 5
    %v1738 = vperm.slane %v1715, 6
    %v1739 = vperm.slane %v1715, 7
    %v1740 = vperm.slane %v1717, 0
    %v1741 = vperm.slane %v1717, 1
    %v1742 = vperm.slane %v1717, 2
    %v1743 = vperm.slane %v1717, 3
    %v1744 = vperm.slane %v1717, 4
    %v1745 = vperm.slane %v1717, 5
    %v1746 = vperm.slane %v1717, 6
    %v1747 = vperm.slane %v1717, 7
    %v1748 = vperm.slane %v1719, 0
    %v1749 = vperm.slane %v1719, 1
    %v1750 = vperm.slane %v1719, 2
    %v1751 = vperm.slane %v1719, 3
    %v1752 = vperm.slane %v1719, 4
    %v1753 = vperm.slane %v1719, 5
    %v1754 = vperm.slane %v1719, 6
    %v1755 = vperm.slane %v1719, 7
    %v1756 = vperm.slane %v1721, 0
    %v1757 = vperm.slane %v1721, 1
    %v1758 = vperm.slane %v1721, 2
    %v1759 = vperm.slane %v1721, 3
    %v1760 = vperm.slane %v1721, 4
    %v1761 = vperm.slane %v1721, 5
    %v1762 = vperm.slane %v1721, 6
    %v1763 = vperm.slane %v1721, 7
    %v1764 = vperm.slane %v1723, 0
    %v1765 = vperm.slane %v1723, 1
    %v1766 = vperm.slane %v1723, 2
    %v1767 = vperm.slane %v1723, 3
    %v1768 = vperm.slane %v1723, 4
    %v1769 = vperm.slane %v1723, 5
    %v1770 = vperm.slane %v1723, 6
    %v1771 = vperm.slane %v1723, 7
    %v1772 = vperm.slane %v1725, 0
    %v1773 = vperm.slane %v1725, 1
    %v1816 = vadd.f32 %v1672, %v1732
    %v1817 = vadd.f32 %v1673, %v1733
    %v1818 = vadd.f32 %v1674, %v1734
    %v1819 = vadd.f32 %v1675, %v1735
    %v1820 = vadd.f32 %v1676, %v1736
    %v1821 = vadd.f32 %v1677, %v1737
    %v1822 = vadd.f32 %v1678, %v1738
    %v1823 = vadd.f32 %v1679, %v1739
    %v1824 = vadd.f32 %v1680, %v1740
    %v1825 = vadd.f32 %v1681, %v1741
    %v1826 = vadd.f32 %v1682, %v1742
    %v1827 = vadd.f32 %v1683, %v1743
    %v1828 = vadd.f32 %v1684, %v1744
    %v1829 = vadd.f32 %v1685, %v1745
    %v1830 = vadd.f32 %v1686, %v1746
    %v1831 = vadd.f32 %v1687, %v1747
    %v1832 = vadd.f32 %v1688, %v1748
    %v1833 = vadd.f32 %v1689, %v1749
    %v1834 = vadd.f32 %v1690, %v1750
    %v1835 = vadd.f32 %v1691, %v1751
    %v1836 = vadd.f32 %v1692, %v1752
    %v1837 = vadd.f32 %v1693, %v1753
    %v1838 = vadd.f32 %v1694, %v1754
    %v1839 = vadd.f32 %v1695, %v1755
    %v1840 = vadd.f32 %v1696, %v1756
    %v1841 = vadd.f32 %v1697, %v1757
    %v1842 = vadd.f32 %v1698, %v1758
    %v1843 = vadd.f32 %v1699, %v1759
    %v1844 = vadd.f32 %v1700, %v1760
    %v1845 = vadd.f32 %v1701, %v1761
    %v1846 = vadd.f32 %v1702, %v1762
    %v1847 = vadd.f32 %v1703, %v1763
    %v1848 = vadd.f32 %v1704, %v1764
    %v1849 = vadd.f32 %v1705, %v1765
    %v1850 = vadd.f32 %v1706, %v1766
    %v1851 = vadd.f32 %v1707, %v1767
    %v1852 = vadd.f32 %v1708, %v1768
    %v1853 = vadd.f32 %v1709, %v1769
    %v1854 = vadd.f32 %v1710, %v1770
    %v1855 = vadd.f32 %v1711, %v1771
    %v1856 = vadd.f32 %v1712, %v1772
    %v1857 = vadd.f32 %v1713, %v1773
    %v1858 = vmax.f32 %v1816, 0.0
    %v1859 = vmax.f32 %v1817, 0.0
    %v1860 = vmax.f32 %v1818, 0.0
    %v1861 = vmax.f32 %v1819, 0.0
    %v1862 = vmax.f32 %v1820, 0.0
    %v1863 = vmax.f32 %v1821, 0.0
    %v1864 = vmax.f32 %v1822, 0.0
    %v1865 = vmax.f32 %v1823, 0.0
    %v1866 = vmax.f32 %v1824, 0.0
    %v1867 = vmax.f32 %v1825, 0.0
    %v1868 = vmax.f32 %v1826, 0.0
    %v1869 = vmax.f32 %v1827, 0.0
    %v1870 = vmax.f32 %v1828, 0.0
    %v1871 = vmax.f32 %v1829, 0.0
    %v1872 = vmax.f32 %v1830, 0.0
    %v1873 = vmax.f32 %v1831, 0.0
    %v1874 = vmax.f32 %v1832, 0.0
    %v1875 = vmax.f32 %v1833, 0.0
    %v1876 = vmax.f32 %v1834, 0.0
    %v1877 = vmax.f32 %v1835, 0.0
    %v1878 = vmax.f32 %v1836, 0.0
    %v1879 = vmax.f32 %v1837, 0.0
    %v1880 = vmax.f32 %v1838, 0.0
    %v1881 = vmax.f32 %v1839, 0.0
    %v1882 = vmax.f32 %v1840, 0.0
    %v1883 = vmax.f32 %v1841, 0.0
    %v1884 = vmax.f32 %v1842, 0.0
    %v1885 = vmax.f32 %v1843, 0.0
    %v1886 = vmax.f32 %v1844, 0.0
    %v1887 = vmax.f32 %v1845, 0.0
    %v1888 = vmax.f32 %v1846, 0.0
    %v1889 = vmax.f32 %v1847, 0.0
    %v1890 = vmax.f32 %v1848, 0.0
    %v1891 = vmax.f32 %v1849, 0.0
    %v1892 = vmax.f32 %v1850, 0.0
    %v1893 = vmax.f32 %v1851, 0.0
    %v1894 = vmax.f32 %v1852, 0.0
    %v1895 = vmax.f32 %v1853, 0.0
    %v1896 = vmax.f32 %v1854, 0.0
    %v1897 = vmax.f32 %v1855, 0.0
    %v1898 = vmax.f32 %v1856, 0.0
    %v1899 = vmax.f32 %v1857, 0.0
    %1900 = vst [vmem:[#allocation8] sm:$0xff] %v1858
    %1901 = vst [vmem:[#allocation8 + $0x8] sm:$0xff] %v1859
    %1902 = vst [vmem:[#allocation8 + $0x10] sm:$0xff] %v1860
    %1903 = vst [vmem:[#allocation8 + $0x18] sm:$0xff] %v1861
    %1904 = vst [vmem:[#allocation8 + $0x20] sm:$0xff] %v1862
    %1905 = vst [vmem:[#allocation8 + $0x28] sm:$0xff] %v1863
    %1906 = vst [vmem:[#allocation8 + $0x30] sm:$0xff] %v1864
    %1907 = vst [vmem:[#allocation8 + $0x38] sm:$0xff] %v1865
    %1908 = vst [vmem:[#allocation8 + $0x40] sm:$0xff] %v1866
    %1909 = vst [vmem:[#allocation8 + $0x48] sm:$0xff] %v1867
    %1910 = vst [vmem:[#allocation8 + $0x50] sm:$0xff] %v1868
    %1911 = vst [vmem:[#allocation8 + $0x58] sm:$0xff] %v1869
    %1912 = vst [vmem:[#allocation8 + $0x60] sm:$0xff] %v1870
    %1913 = vst [vmem:[#allocation8 + $0x68] sm:$0xff] %v1871
    %1914 = vst [vmem:[#allocation8 + $0x70] sm:$0xff] %v1872
    %1915 = vst [vmem:[#allocation8 + $0x78] sm:$0xff] %v1873
    %1916 = vst [vmem:[#allocation8 + $0x80] sm:$0xff] %v1874
    %1917 = vst [vmem:[#allocation8 + $0x88] sm:$0xff] %v1875
    %1918 = vst [vmem:[#allocation8 + $0x90] sm:$0xff] %v1876
    %1919 = vst [vmem:[#allocation8 + $0x98] sm:$0xff] %v1877
    %1920 = vst [vmem:[#allocation8 + $0xa0] sm:$0xff] %v1878
    %1921 = vst [vmem:[#allocation8 + $0xa8] sm:$0xff] %v1879
    %1922 = vst [vmem:[#allocation8 + $0xb0] sm:$0xff] %v1880
    %1923 = vst [vmem:[#allocation8 + $0xb8] sm:$0xff] %v1881
    %1924 = vst [vmem:[#allocation8 + $0xc0] sm:$0xff] %v1882
    %1925 = vst [vmem:[#allocation8 + $0xc8] sm:$0xff] %v1883
    %1926 = vst [vmem:[#allocation8 + $0xd0] sm:$0xff] %v1884
    %1927 = vst [vmem:[#allocation8 + $0xd8] sm:$0xff] %v1885
    %1928 = vst [vmem:[#allocation8 + $0xe0] sm:$0xff] %v1886
    %1929 = vst [vmem:[#allocation8 + $0xe8] sm:$0xff] %v1887
    %1930 = vst [vmem:[#allocation8 + $0xf0] sm:$0xff] %v1888
    %1931 = vst [vmem:[#allocation8 + $0xf8] sm:$0xff] %v1889
    %1932 = vst [vmem:[#allocation8 + $0x100] sm:$0xff] %v1890
    %1933 = vst [vmem:[#allocation8 + $0x108] sm:$0xff] %v1891
    %1934 = vst [vmem:[#allocation8 + $0x110] sm:$0xff] %v1892
    %1935 = vst [vmem:[#allocation8 + $0x118] sm:$0xff] %v1893
    %1936 = vst [vmem:[#allocation8 + $0x120] sm:$0xff] %v1894
    %1937 = vst [vmem:[#allocation8 + $0x128] sm:$0xff] %v1895
    %1938 = vst [vmem:[#allocation8 + $0x130] sm:$0xff] %v1896
    %1939 = vst [vmem:[#allocation8 + $0x138] sm:$0xff] %v1897
    %1940 = vst [vmem:[#allocation8 + $0x140] sm:$0xff] %v1898
    %1941 = vst [vmem:[#allocation8 + $0x148] sm:$0xff] %v1899
    // Predicated region
    $region26: #{tpu_custom_call.1} parent=1 // pred_check
      _
    $region27: #{tpu_custom_call.1} parent=1 // pred_check_branch
      %1943 = sbr.rel (0) target = $region29
    $region28: #{tpu_custom_call.1} parent=1 // pred_region
      %1945 = vsyncadd [#allocation4], 0
      %s1947 = sshll.u32 [#allocation8], 4
      %s1948 = int_to_ptr.vmem [resolvable:$true] %s1947
      %s1949 = sshll.u32 %s3, 4
      %s1950 = int_to_ptr.hbm [resolvable:$true] %s1949
      %1952 = dma.vmem_to_hbm [thread:$0]  %s1948, 5376, %s1950, [#allocation4]
    $region29: #{tpu_custom_call.1} parent=1 // pred_fallthru
      _
    // Predicated region
    $region30: #{tpu_custom_call.1} parent=1 // pred_check
      _
    $region31: #{tpu_custom_call.1} parent=1 // pred_check_branch
      %1954 = sbr.rel (0) target = $region33
    $region32: #{tpu_custom_call.1} parent=1 // pred_region
      %1956 = dma.done [#allocation4], 5376
    $region33: #{tpu_custom_call.1} parent=1 // pred_fallthru
      _
    %1957 = vsyncpa [#allocation3], 1
    %1958 = vsyncpa [#allocation6], 1
    %1959 = vsyncpa [#allocation4], 1

</llo_original>
